<compile_context>
chip_gen: v5e
topology: v5e:2x2
jax: 0.10.0
libtpu: 0.0.40
codegen_flags: <defaults>
</compile_context>

<pallas_src>
import functools

import jax
import jax.numpy as jnp
import numpy as np
from jax.experimental import pallas as pl
from jax.experimental.pallas import tpu as pltpu

LN_EPS = 1e-5
LANE = 128


def _cdiv(a, b):
    return -(-a // b)


def _round_up(a, b):
    return _cdiv(a, b) * b


def _tpu_generation_info():
    """Best-effort (vmem_bytes_per_core, tensorcores_per_chip, bf16_vpu_native)."""
    kind = ""
    try:
        kind = jax.devices()[0].device_kind.lower()
    except Exception:
        pass
    if "v5 lite" in kind or "v5e" in kind or "v5lite" in kind:
        return 128 * 2**20, 1, False          # v5e: 1 TC, no bf16 VPU, 128 MiB VMEM
    if "v6" in kind:
        return 128 * 2**20, 1, True           # v6e: 1 TC, bf16 VPU, 128 MiB VMEM
    if "7" in kind:
        return 64 * 2**20, 2, True            # v7x: 2 TC/chip, bf16 VPU, 64 MiB/TC
    # Unknown generation: query if possible, otherwise stay conservative.
    vmem_cap = 64 * 2**20
    try:
        vmem_cap = int(pltpu.get_tpu_info().vmem_capacity_bytes)
    except Exception:
        pass
    return vmem_cap, 2, False


def convlinear_kernel(x_ref, gamma_ref, beta_ref, wdw_ref, wpw_ref, bias_ref,
                      o_ref, xpad_ref, *, k, d_in_true, seq_true, lead):
    tn, seq_p, d_in_p = x_ref.shape
    pad = k // 2
    stage_dtype = xpad_ref.dtype

    x = x_ref[...].astype(jnp.float32)                        # (tn, Lp, Dp_in)

    # ---- LayerNorm over the true channel width (fused stats; padded lanes are 0,
    #      padded gamma/beta are 0 so padded lanes of xn stay 0). ----
    inv_d = jnp.float32(1.0 / d_in_true)
    mean = jnp.sum(x, axis=-1, keepdims=True) * inv_d
    mean_sq = jnp.sum(x * x, axis=-1, keepdims=True) * inv_d
    var = mean_sq - mean * mean
    xn = (x - mean) * jax.lax.rsqrt(var + LN_EPS) * gamma_ref[...] + beta_ref[...]

    # ---- Dropout (p=0.1): inference mode -> identity ----

    # ---- Stage xn into the zero-haloed VMEM scratch.  Only the halo bands are
    #      zeroed (the middle band is fully overwritten right below), and only
    #      the true-L rows are written so the conv sees correct zero padding even
    #      when L was padded up to a multiple of 8 in the wrapper. ----
    xn_s = xn.astype(stage_dtype)
    if seq_true < seq_p:
        xn_s = xn_s[:, :seq_true, :]          # L-padded rows would be beta, not 0
    if lead > 0:
        xpad_ref[:, :lead, :] = jnp.zeros((tn, lead, d_in_p), stage_dtype)
    tail = lead + seq_true
    tail_len = xpad_ref.shape[1] - tail
    if tail_len > 0:
        xpad_ref[:, tail:, :] = jnp.zeros((tn, tail_len, d_in_p), stage_dtype)
    xpad_ref[:, lead:lead + seq_true, :] = xn_s

    # ---- Depthwise conv along L: k static shifted slices of the zero-padded
    #      scratch (no per-tap compare/select, no roll). ----
    # TODO(synk): generating the taps with pltpu.roll on the in-register xn would
    # avoid k unaligned VMEM re-reads; keep the scratch form until a bundle dump
    # confirms whether vld or the XLU binds.
    wdw = wdw_ref[...]                                        # (k, Dp_in), stage dtype
    base = lead - pad
    y = xpad_ref[:, base:base + seq_p, :] * wdw[0]
    for t in range(1, k):                                     # static, small k
        y = y + xpad_ref[:, base + t:base + t + seq_p, :] * wdw[t]

    # ---- Pointwise 1x1 conv: one (tn*Lp, Dp_in) @ (Dp_in, Dp_out) MXU matmul
    #      with f32 accumulation, then bias + ReLU.  Lp % 8 == 0 always, so the
    #      reshape never relayouts (no per-sample fallback branch needed). ----
    wpw = wpw_ref[...]
    y2 = y.reshape(tn * seq_p, d_in_p).astype(wpw.dtype)      # no-op cast on bf16 path
    out = jnp.dot(y2, wpw, preferred_element_type=jnp.float32)
    out = jnp.maximum(out + bias_ref[...], 0.0)
    o_ref[...] = out.reshape(tn, seq_p, -1).astype(o_ref.dtype)


def _per_row_vmem_bytes(seq_p, d_in_p, d_out_p, lead, pad, x_itemsize, stage_itemsize):
    """Per-batch-row VMEM footprint of one grid step: pipelined in/out blocks,
    the conv scratch, and compiler-materialized full-tile temporaries."""
    return (2 * seq_p * d_in_p * x_itemsize                    # double-buffered input
            + 2 * seq_p * d_out_p * x_itemsize                 # double-buffered output
            + (lead + seq_p + pad) * d_in_p * stage_itemsize   # conv scratch
            + seq_p * d_in_p * (4 + 2 * stage_itemsize)        # x (f32) + xn + tap accum
            + seq_p * d_out_p * (4 + stage_itemsize))          # matmul out (f32) + y2


def _choose_block_n(n, seq_p, per_n, budget, num_tc):
    """Batch tile: as large as the VMEM budget allows (tile size dominates for this
    memory-bound layer).  Single-TC chips (v5e/v6e) get no grid-step clamp; 2-TC
    chips (v7x) keep >= 2 grid steps per TensorCore so DMA overlaps compute."""
    max_by_vmem = max(1, budget // per_n)
    target = max(1, _cdiv(2048, seq_p))        # ~2k MXU rows/step amortizes step cost
    bn = max(1, min(n, target, max_by_vmem))
    if num_tc >= 2 and n >= 2:
        bn = min(bn, max(1, n // (2 * num_tc)))
    return int(bn)


def conv_linear_forward(x, gamma, beta, w_dw, w_pw_t, b_pw, *, k,
                        block_n=None, matmul_dtype=jnp.bfloat16):
    """x: (N, L, D_in) -> (N, L, D_out).

    Channels are zero-padded to lane multiples (128) and L to a sublane multiple
    (8) only when needed; in the common TVQAplus case (D=128, L%8==0) x is passed
    straight through with no extra HBM copy.  Pass matmul_dtype=jnp.float32 to
    keep full-precision MXU operands (and f32 staging) if parity matters.
    """
    N, L, D_in = x.shape
    D_out = w_pw_t.shape[1]
    pad = k // 2
    lead = _round_up(pad, 8) if pad > 0 else 0

    vmem_cap, num_tc, bf16_vpu = _tpu_generation_info()
    use_bf16_stage = bf16_vpu and jnp.dtype(matmul_dtype) == jnp.dtype(jnp.bfloat16)
    stage_dtype = jnp.bfloat16 if use_bf16_stage else jnp.float32

    d_in_p = _round_up(D_in, LANE)
    d_out_p = _round_up(D_out, LANE)
    l_p = _round_up(L, 8)
    x_itemsize = jnp.dtype(x.dtype).itemsize
    stage_itemsize = jnp.dtype(stage_dtype).itemsize

    # Generation-aware block budget: ~75% of VMEM on 128 MiB parts (v5e/v6e),
    # ~55% on the 64 MiB-per-core v7x (headroom for compiler temporaries).
    block_budget = int(vmem_cap * (0.75 if vmem_cap >= 96 * 2**20 else 0.55))
    per_n = _per_row_vmem_bytes(l_p, d_in_p, d_out_p, lead, pad,
                                x_itemsize, stage_itemsize)

    if block_n is None:
        block_n = _choose_block_n(N, l_p, per_n, block_budget, num_tc)
        if N % block_n != 0:
            # Prefer a divisor of N (>= half the ideal tile) so x needs no batch pad.
            for d in range(block_n, 0, -1):
                if N % d == 0 and 2 * d >= block_n:
                    block_n = d
                    break
    block_n = max(1, min(block_n, N))
    n_p = _round_up(N, block_n)

    # Pad x only when genuinely required (ragged batch block / non-lane channels /
    # non-sublane L); otherwise avoid the extra HBM read+write entirely.
    if (n_p, l_p, d_in_p) != (N, L, D_in):
        xp = jnp.pad(x, ((0, n_p - N), (0, l_p - L), (0, d_in_p - D_in)))
    else:
        xp = x
    # TODO(synk): handle the ragged final batch/L block in-kernel (mask + pl.when)
    # to avoid this HBM round trip when padding really is needed.

    gp = jnp.pad(gamma.reshape(1, D_in).astype(jnp.float32),
                 ((0, 0), (0, d_in_p - D_in)))
    bp = jnp.pad(beta.reshape(1, D_in).astype(jnp.float32),
                 ((0, 0), (0, d_in_p - D_in)))
    wdwp = jnp.pad(w_dw, ((0, 0), (0, d_in_p - D_in))).astype(stage_dtype)
    wpwp = jnp.pad(w_pw_t, ((0, d_in_p - D_in),
                            (0, d_out_p - D_out))).astype(matmul_dtype)
    bpwp = jnp.pad(b_pw.reshape(1, D_out).astype(jnp.float32),
                   ((0, 0), (0, d_out_p - D_out)))

    # Scoped-VMEM limit: estimate includes blocks, scratch, temporaries and params.
    param_bytes = (2 * d_in_p * 4 + k * d_in_p * stage_itemsize
                   + d_in_p * d_out_p * jnp.dtype(matmul_dtype).itemsize
                   + d_out_p * 4)
    est = block_n * per_n + 2 * param_bytes + 4 * 2**20
    vmem_limit = int(min(max(est, 16 * 2**20), vmem_cap - 8 * 2**20))

    kernel = functools.partial(convlinear_kernel, k=k, d_in_true=D_in,
                               seq_true=L, lead=lead)

    def build_and_run(single_buffer_params):
        def cspec(shape):
            rank = len(shape)

            def idx(n):
                return (0,) * rank

            if single_buffer_params:
                # Constant-index parameter blocks: one buffer is enough.
                return pl.BlockSpec(shape, idx, pipeline_mode=pl.Buffered(1))
            return pl.BlockSpec(shape, idx)

        grid_spec = pltpu.PrefetchScalarGridSpec(
            num_scalar_prefetch=0,
            grid=(n_p // block_n,),
            in_specs=[
                pl.BlockSpec((block_n, l_p, d_in_p), lambda n: (n, 0, 0)),   # x
                cspec((1, d_in_p)),                                          # LN gamma
                cspec((1, d_in_p)),                                          # LN beta
                cspec((k, d_in_p)),                                          # depthwise w
                cspec((d_in_p, d_out_p)),                                    # pointwise w^T
                cspec((1, d_out_p)),                                         # pointwise bias
            ],
            out_specs=pl.BlockSpec((block_n, l_p, d_out_p), lambda n: (n, 0, 0)),
            scratch_shapes=[
                pltpu.VMEM((block_n, lead + l_p + pad, d_in_p), stage_dtype)],
        )
        return pl.pallas_call(
            kernel,
            out_shape=jax.ShapeDtypeStruct((n_p, l_p, d_out_p), x.dtype),
            grid_spec=grid_spec,
            compiler_params=pltpu.CompilerParams(
                dimension_semantics=("parallel",),
                vmem_limit_bytes=vmem_limit),
        )(xp, gp, bp, wdwp, wpwp, bpwp)

    try:
        out_p = build_and_run(True)
    except Exception:
        # pl.Buffered(1) not supported by this jax build/lowering: fall back to the
        # default double-buffered parameter blocks (costs a few hundred KiB VMEM).
        out_p = build_and_run(False)

    return out_p[:N, :L, :D_out]


def reference_forward(x, gamma, beta, w_dw, w_pw_t, b_pw, *, k):
    """Pure-JAX f32 reference mirroring the PyTorch module (eval mode)."""
    x = x.astype(jnp.float32)
    mean = jnp.mean(x, axis=-1, keepdims=True)
    var = jnp.mean((x - mean) ** 2, axis=-1, keepdims=True)
    xn = (x - mean) / jnp.sqrt(var + LN_EPS) * gamma.reshape(-1) + beta.reshape(-1)
    pad = k // 2
    N, L, D_in = xn.shape
    xp = jnp.pad(xn, ((0, 0), (pad, pad), (0, 0)))
    y = jnp.zeros((N, L, D_in), jnp.float32)
    for t in range(k):
        y = y + xp[:, t:t + L, :] * w_dw[t][None, None, :]
    out = jnp.einsum('nld,de->nle', y, w_pw_t) + b_pw.reshape(-1)[None, None, :]
    return jnp.maximum(out, 0.0)


def _run_case(key, N, L, D_in, D_out, K):
    kx, kdw, kpw, kb, kg, kbt = jax.random.split(key, 6)
    x = jax.random.normal(kx, (N, L, D_in), dtype=jnp.float32)
    # LayerNorm params (perturbed from the PyTorch default 1/0 so the affine path
    # is actually exercised).
    gamma = (1.0 + 0.1 * jax.random.normal(kg, (1, D_in))).astype(jnp.float32)
    beta = (0.1 * jax.random.normal(kbt, (1, D_in))).astype(jnp.float32)
    # Depthwise Conv1d weight (D_in, 1, K) stored as (K, D_in); pointwise Conv1d
    # weight (D_out, D_in, 1) stored transposed as (D_in, D_out).
    w_dw = (0.5 * jax.random.normal(kdw, (K, D_in))).astype(jnp.float32)
    w_pw_t = (0.5 * jax.random.normal(kpw, (D_in, D_out))).astype(jnp.float32)
    b_pw = (0.1 * jax.random.normal(kb, (1, D_out))).astype(jnp.float32)

    out = conv_linear_forward(x, gamma, beta, w_dw, w_pw_t, b_pw, k=K)
    out = jax.block_until_ready(out)

    ref = reference_forward(x, gamma, beta, w_dw, w_pw_t, b_pw, k=K)
    # Tolerance relaxed for bf16 staging / bf16 MXU operands (accum stays f32).
    np.testing.assert_allclose(np.asarray(out), np.asarray(ref),
                               rtol=2e-2, atol=5e-2)


if __name__ == "__main__":
    base = jax.random.PRNGKey(0)
    k1, k2, k3 = jax.random.split(base, 3)
    # Main case: lane-dense channels (TVQAplus hidden size 128), no wrapper pads.
    _run_case(k1, N=4, L=16, D_in=128, D_out=128, K=3)
    # Non-lane channel widths exercise the channel-padding path.
    _run_case(k2, N=2, L=8, D_in=48, D_out=32, K=3)
    # L not a multiple of 8 exercises the L-padding + true-L conv halo path.
    _run_case(k3, N=3, L=7, D_in=48, D_out=32, K=3)
    print("KERNEL_OK")
</pallas_src>

<mosaic_0001>
module attributes {stable_mosaic.version = 11 : i64} {
  func.func @convlinear_kernel(%arg0: i32, %arg1: memref<1x16x128xf32, #tpu.memory_space<vmem>>, %arg2: memref<1x128xf32, #tpu.memory_space<vmem>>, %arg3: memref<1x128xf32, #tpu.memory_space<vmem>>, %arg4: memref<3x128xf32, #tpu.memory_space<vmem>>, %arg5: memref<128x128xbf16, #tpu.memory_space<vmem>>, %arg6: memref<1x128xf32, #tpu.memory_space<vmem>>, %arg7: memref<1x16x128xf32, #tpu.memory_space<vmem>>, %arg8: memref<1x25x128xf32, #tpu.memory_space<vmem>>) attributes {dimension_semantics = [#tpu.dimension_semantics<parallel>], iteration_bounds = array<i64: 4>, scalar_prefetch = 0 : i64, scratch_operands = 1 : i64, tpu.core_type = #tpu.core_type<tc>, window_params = [{transform_indices = @transform_0, window_bounds = array<i64: 1, 16, 128>}, {pipeline_mode = #tpu.pipeline_mode<synchronous>, transform_indices = @transform_1, window_bounds = array<i64: 1, 128>}, {pipeline_mode = #tpu.pipeline_mode<synchronous>, transform_indices = @transform_2, window_bounds = array<i64: 1, 128>}, {pipeline_mode = #tpu.pipeline_mode<synchronous>, transform_indices = @transform_3, window_bounds = array<i64: 3, 128>}, {pipeline_mode = #tpu.pipeline_mode<synchronous>, transform_indices = @transform_4, window_bounds = array<i64: 128, 128>}, {pipeline_mode = #tpu.pipeline_mode<synchronous>, transform_indices = @transform_5, window_bounds = array<i64: 1, 128>}, {transform_indices = @transform_6, window_bounds = array<i64: 1, 16, 128>}]} {
    %c0 = arith.constant 0 : index
    %c0_0 = arith.constant 0 : index
    %c0_1 = arith.constant 0 : index
    %0 = vector.load %arg1[%c0, %c0_0, %c0_1] : memref<1x16x128xf32, #tpu.memory_space<vmem>>, vector<1x16x128xf32>
    %cst = arith.constant dense<0.000000e+00> : vector<1x16xf32>
    %1 = vector.multi_reduction <add>, %0, %cst [2] : vector<1x16x128xf32> to vector<1x16xf32>
    %2 = vector.shape_cast %1 : vector<1x16xf32> to vector<1x16x1xf32>
    %cst_2 = arith.constant 7.812500e-03 : f32
    %3 = vector.broadcast %cst_2 : f32 to vector<1x16x1xf32>
    %4 = arith.mulf %2, %3 : vector<1x16x1xf32>
    %5 = arith.mulf %0, %0 : vector<1x16x128xf32>
    %cst_3 = arith.constant dense<0.000000e+00> : vector<1x16xf32>
    %6 = vector.multi_reduction <add>, %5, %cst_3 [2] : vector<1x16x128xf32> to vector<1x16xf32>
    %7 = vector.shape_cast %6 : vector<1x16xf32> to vector<1x16x1xf32>
    %cst_4 = arith.constant 7.812500e-03 : f32
    %8 = vector.broadcast %cst_4 : f32 to vector<1x16x1xf32>
    %9 = arith.mulf %7, %8 : vector<1x16x1xf32>
    %10 = arith.mulf %4, %4 : vector<1x16x1xf32>
    %11 = arith.subf %9, %10 : vector<1x16x1xf32>
    %12 = vector.broadcast %4 : vector<1x16x1xf32> to vector<1x16x128xf32>
    %13 = arith.subf %0, %12 : vector<1x16x128xf32>
    %cst_5 = arith.constant 9.99999974E-6 : f32
    %14 = vector.broadcast %cst_5 : f32 to vector<1x16x1xf32>
    %15 = arith.addf %11, %14 : vector<1x16x1xf32>
    %16 = math.rsqrt %15 : vector<1x16x1xf32>
    %17 = vector.broadcast %16 : vector<1x16x1xf32> to vector<1x16x128xf32>
    %18 = arith.mulf %13, %17 : vector<1x16x128xf32>
    %c0_6 = arith.constant 0 : index
    %c0_7 = arith.constant 0 : index
    %19 = vector.load %arg2[%c0_6, %c0_7] : memref<1x128xf32, #tpu.memory_space<vmem>>, vector<1x128xf32>
    %20 = vector.shape_cast %19 : vector<1x128xf32> to vector<1x1x128xf32>
    %21 = vector.broadcast %20 : vector<1x1x128xf32> to vector<1x16x128xf32>
    %22 = arith.mulf %18, %21 : vector<1x16x128xf32>
    %c0_8 = arith.constant 0 : index
    %c0_9 = arith.constant 0 : index
    %23 = vector.load %arg3[%c0_8, %c0_9] : memref<1x128xf32, #tpu.memory_space<vmem>>, vector<1x128xf32>
    %24 = vector.shape_cast %23 : vector<1x128xf32> to vector<1x1x128xf32>
    %25 = vector.broadcast %24 : vector<1x1x128xf32> to vector<1x16x128xf32>
    %26 = arith.addf %22, %25 : vector<1x16x128xf32>
    %cst_10 = arith.constant 0.000000e+00 : f32
    %27 = vector.broadcast %cst_10 : f32 to vector<1x8x128xf32>
    %c0_11 = arith.constant 0 : index
    %c0_12 = arith.constant 0 : index
    %c0_13 = arith.constant 0 : index
    %28 = vector.load %arg8[%c0_11, %c0_12, %c0_13] : memref<1x25x128xf32, #tpu.memory_space<vmem>>, vector<1x8x128xf32>
    tpu.vector_store %arg8[%c0_11, %c0_12, %c0_13], %27 {strides = array<i32>} : memref<1x25x128xf32, #tpu.memory_space<vmem>>, vector<1x8x128xf32>,
    %cst_14 = arith.constant 0.000000e+00 : f32
    %29 = vector.broadcast %cst_14 : f32 to vector<1x1x128xf32>
    %c0_15 = arith.constant 0 : index
    %c24 = arith.constant 24 : index
    %c0_16 = arith.constant 0 : index
    %30 = vector.load %arg8[%c0_15, %c24, %c0_16] : memref<1x25x128xf32, #tpu.memory_space<vmem>>, vector<1x1x128xf32>
    tpu.vector_store %arg8[%c0_15, %c24, %c0_16], %29 {strides = array<i32>} : memref<1x25x128xf32, #tpu.memory_space<vmem>>, vector<1x1x128xf32>,
    %c0_17 = arith.constant 0 : index
    %c8 = arith.constant 8 : index
    %c0_18 = arith.constant 0 : index
    %31 = vector.load %arg8[%c0_17, %c8, %c0_18] : memref<1x25x128xf32, #tpu.memory_space<vmem>>, vector<1x16x128xf32>
    tpu.vector_store %arg8[%c0_17, %c8, %c0_18], %26 {strides = array<i32>} : memref<1x25x128xf32, #tpu.memory_space<vmem>>, vector<1x16x128xf32>,
    %c0_19 = arith.constant 0 : index
    %c0_20 = arith.constant 0 : index
    %32 = vector.load %arg4[%c0_19, %c0_20] : memref<3x128xf32, #tpu.memory_space<vmem>>, vector<3x128xf32>
    %c0_21 = arith.constant 0 : index
    %c7 = arith.constant 7 : index
    %c0_22 = arith.constant 0 : index
    %33 = vector.load %arg8[%c0_21, %c7, %c0_22] : memref<1x25x128xf32, #tpu.memory_space<vmem>>, vector<1x16x128xf32>
    %34 = vector.extract_strided_slice %32 {offsets = [0, 0], sizes = [1, 128], strides = [1, 1]} : vector<3x128xf32> to vector<1x128xf32>
    %35 = vector.shape_cast %34 : vector<1x128xf32> to vector<128xf32>
    %36 = vector.shape_cast %35 : vector<128xf32> to vector<1x1x128xf32>
    %37 = vector.broadcast %36 : vector<1x1x128xf32> to vector<1x16x128xf32>
    %38 = arith.mulf %33, %37 : vector<1x16x128xf32>
    %c0_23 = arith.constant 0 : index
    %c8_24 = arith.constant 8 : index
    %c0_25 = arith.constant 0 : index
    %39 = vector.load %arg8[%c0_23, %c8_24, %c0_25] : memref<1x25x128xf32, #tpu.memory_space<vmem>>, vector<1x16x128xf32>
    %40 = vector.extract_strided_slice %32 {offsets = [1, 0], sizes = [1, 128], strides = [1, 1]} : vector<3x128xf32> to vector<1x128xf32>
    %41 = vector.shape_cast %40 : vector<1x128xf32> to vector<128xf32>
    %42 = vector.shape_cast %41 : vector<128xf32> to vector<1x1x128xf32>
    %43 = vector.broadcast %42 : vector<1x1x128xf32> to vector<1x16x128xf32>
    %44 = arith.mulf %39, %43 : vector<1x16x128xf32>
    %45 = arith.addf %38, %44 : vector<1x16x128xf32>
    %c0_26 = arith.constant 0 : index
    %c9 = arith.constant 9 : index
    %c0_27 = arith.constant 0 : index
    %46 = vector.load %arg8[%c0_26, %c9, %c0_27] : memref<1x25x128xf32, #tpu.memory_space<vmem>>, vector<1x16x128xf32>
    %47 = vector.extract_strided_slice %32 {offsets = [2, 0], sizes = [1, 128], strides = [1, 1]} : vector<3x128xf32> to vector<1x128xf32>
    %48 = vector.shape_cast %47 : vector<1x128xf32> to vector<128xf32>
    %49 = vector.shape_cast %48 : vector<128xf32> to vector<1x1x128xf32>
    %50 = vector.broadcast %49 : vector<1x1x128xf32> to vector<1x16x128xf32>
    %51 = arith.mulf %46, %50 : vector<1x16x128xf32>
    %52 = arith.addf %45, %51 : vector<1x16x128xf32>
    %c0_28 = arith.constant 0 : index
    %c0_29 = arith.constant 0 : index
    %53 = vector.load %arg5[%c0_28, %c0_29] : memref<128x128xbf16, #tpu.memory_space<vmem>>, vector<128x128xbf16>
    %54 = vector.shape_cast %52 : vector<1x16x128xf32> to vector<16x128xf32>
    %55 = arith.truncf %54 : vector<16x128xf32> to vector<16x128xbf16>
    %cst_30 = arith.constant dense<0.000000e+00> : vector<16x128xf32>
    %56 = tpu.matmul %55, %53, %cst_30 {dimension_numbers = #tpu.dot_dimension_numbers<[1], [0], [0], [1], [0, 0, 1, 1], [], []>} : vector<16x128xbf16>, vector<128x128xbf16>, vector<16x128xf32> -> vector<16x128xf32>
    %c0_31 = arith.constant 0 : index
    %c0_32 = arith.constant 0 : index
    %57 = vector.load %arg6[%c0_31, %c0_32] : memref<1x128xf32, #tpu.memory_space<vmem>>, vector<1x128xf32>
    %58 = vector.broadcast %57 : vector<1x128xf32> to vector<16x128xf32>
    %59 = arith.addf %56, %58 : vector<16x128xf32>
    %cst_33 = arith.constant 0.000000e+00 : f32
    %60 = vector.broadcast %cst_33 : f32 to vector<16x128xf32>
    %61 = arith.maximumf %59, %60 : vector<16x128xf32>
    %62 = vector.shape_cast %61 : vector<16x128xf32> to vector<1x16x128xf32>
    %c0_34 = arith.constant 0 : index
    %c0_35 = arith.constant 0 : index
    %c0_36 = arith.constant 0 : index
    %63 = vector.load %arg7[%c0_34, %c0_35, %c0_36] : memref<1x16x128xf32, #tpu.memory_space<vmem>>, vector<1x16x128xf32>
    tpu.vector_store %arg7[%c0_34, %c0_35, %c0_36], %62 {strides = array<i32>} : memref<1x16x128xf32, #tpu.memory_space<vmem>>, vector<1x16x128xf32>,
    return
  }
  func.func @transform_0(%arg0: i32) -> (i32, i32, i32) {
    %c0_i32 = arith.constant 0 : i32
    %c0_i32_0 = arith.constant 0 : i32
    %c0_i32_1 = arith.constant 0 : i32
    return %arg0, %c0_i32, %c0_i32_0 : i32, i32, i32
  }
  func.func @transform_1(%arg0: i32) -> (i32, i32) {
    %c0_i32 = arith.constant 0 : i32
    %c0_i32_0 = arith.constant 0 : i32
    %c0_i32_1 = arith.constant 0 : i32
    return %c0_i32, %c0_i32_0 : i32, i32
  }
  func.func @transform_2(%arg0: i32) -> (i32, i32) {
    %c0_i32 = arith.constant 0 : i32
    %c0_i32_0 = arith.constant 0 : i32
    %c0_i32_1 = arith.constant 0 : i32
    return %c0_i32, %c0_i32_0 : i32, i32
  }
  func.func @transform_3(%arg0: i32) -> (i32, i32) {
    %c0_i32 = arith.constant 0 : i32
    %c0_i32_0 = arith.constant 0 : i32
    %c0_i32_1 = arith.constant 0 : i32
    return %c0_i32, %c0_i32_0 : i32, i32
  }
  func.func @transform_4(%arg0: i32) -> (i32, i32) {
    %c0_i32 = arith.constant 0 : i32
    %c0_i32_0 = arith.constant 0 : i32
    %c0_i32_1 = arith.constant 0 : i32
    return %c0_i32, %c0_i32_0 : i32, i32
  }
  func.func @transform_5(%arg0: i32) -> (i32, i32) {
    %c0_i32 = arith.constant 0 : i32
    %c0_i32_0 = arith.constant 0 : i32
    %c0_i32_1 = arith.constant 0 : i32
    return %c0_i32, %c0_i32_0 : i32, i32
  }
  func.func @transform_6(%arg0: i32) -> (i32, i32, i32) {
    %c0_i32 = arith.constant 0 : i32
    %c0_i32_0 = arith.constant 0 : i32
    %c0_i32_1 = arith.constant 0 : i32
    return %arg0, %c0_i32, %c0_i32_0 : i32, i32, i32
  }
}

module attributes {stable_mosaic.version = 11 : i64} {
  func.func @convlinear_kernel(%arg0: i32, %arg1: memref<1x16x128xf32, #tpu.memory_space<vmem>>, %arg2: memref<1x128xf32, #tpu.memory_space<vmem>>, %arg3: memref<1x128xf32, #tpu.memory_space<vmem>>, %arg4: memref<3x128xf32, #tpu.memory_space<vmem>>, %arg5: memref<128x128xbf16, #tpu.memory_space<vmem>>, %arg6: memref<1x128xf32, #tpu.memory_space<vmem>>, %arg7: memref<1x16x128xf32, #tpu.memory_space<vmem>>, %arg8: memref<1x25x128xf32, #tpu.memory_space<vmem>>) attributes {dimension_semantics = [#tpu.dimension_semantics<parallel>], iteration_bounds = array<i64: 4>, scalar_prefetch = 0 : i64, scratch_operands = 1 : i64, tpu.core_type = #tpu.core_type<tc>, window_params = [{transform_indices = @transform_0, window_bounds = array<i64: 1, 16, 128>}, {pipeline_mode = #tpu.pipeline_mode<synchronous>, transform_indices = @transform_1, window_bounds = array<i64: 1, 128>}, {pipeline_mode = #tpu.pipeline_mode<synchronous>, transform_indices = @transform_2, window_bounds = array<i64: 1, 128>}, {pipeline_mode = #tpu.pipeline_mode<synchronous>, transform_indices = @transform_3, window_bounds = array<i64: 3, 128>}, {pipeline_mode = #tpu.pipeline_mode<synchronous>, transform_indices = @transform_4, window_bounds = array<i64: 128, 128>}, {pipeline_mode = #tpu.pipeline_mode<synchronous>, transform_indices = @transform_5, window_bounds = array<i64: 1, 128>}, {transform_indices = @transform_6, window_bounds = array<i64: 1, 16, 128>}]} {
    %c0 = arith.constant 0 : index
    %c0_0 = arith.constant 0 : index
    %c0_1 = arith.constant 0 : index
    %0 = vector.load %arg1[%c0, %c0_0, %c0_1] : memref<1x16x128xf32, #tpu.memory_space<vmem>>, vector<1x16x128xf32>
    %cst = arith.constant dense<0.000000e+00> : vector<1x16xf32>
    %1 = vector.multi_reduction <add>, %0, %cst [2] : vector<1x16x128xf32> to vector<1x16xf32>
    %2 = vector.shape_cast %1 : vector<1x16xf32> to vector<1x16x1xf32>
    %cst_2 = arith.constant 7.812500e-03 : f32
    %3 = vector.broadcast %cst_2 : f32 to vector<1x16x1xf32>
    %4 = arith.mulf %2, %3 : vector<1x16x1xf32>
    %5 = arith.mulf %0, %0 : vector<1x16x128xf32>
    %cst_3 = arith.constant dense<0.000000e+00> : vector<1x16xf32>
    %6 = vector.multi_reduction <add>, %5, %cst_3 [2] : vector<1x16x128xf32> to vector<1x16xf32>
    %7 = vector.shape_cast %6 : vector<1x16xf32> to vector<1x16x1xf32>
    %cst_4 = arith.constant 7.812500e-03 : f32
    %8 = vector.broadcast %cst_4 : f32 to vector<1x16x1xf32>
    %9 = arith.mulf %7, %8 : vector<1x16x1xf32>
    %10 = arith.mulf %4, %4 : vector<1x16x1xf32>
    %11 = arith.subf %9, %10 : vector<1x16x1xf32>
    %12 = vector.broadcast %4 : vector<1x16x1xf32> to vector<1x16x128xf32>
    %13 = arith.subf %0, %12 : vector<1x16x128xf32>
    %cst_5 = arith.constant 9.99999974E-6 : f32
    %14 = vector.broadcast %cst_5 : f32 to vector<1x16x1xf32>
    %15 = arith.addf %11, %14 : vector<1x16x1xf32>
    %16 = math.rsqrt %15 : vector<1x16x1xf32>
    %17 = vector.broadcast %16 : vector<1x16x1xf32> to vector<1x16x128xf32>
    %18 = arith.mulf %13, %17 : vector<1x16x128xf32>
    %c0_6 = arith.constant 0 : index
    %c0_7 = arith.constant 0 : index
    %19 = vector.load %arg2[%c0_6, %c0_7] : memref<1x128xf32, #tpu.memory_space<vmem>>, vector<1x128xf32>
    %20 = vector.shape_cast %19 : vector<1x128xf32> to vector<1x1x128xf32>
    %21 = vector.broadcast %20 : vector<1x1x128xf32> to vector<1x16x128xf32>
    %22 = arith.mulf %18, %21 : vector<1x16x128xf32>
    %c0_8 = arith.constant 0 : index
    %c0_9 = arith.constant 0 : index
    %23 = vector.load %arg3[%c0_8, %c0_9] : memref<1x128xf32, #tpu.memory_space<vmem>>, vector<1x128xf32>
    %24 = vector.shape_cast %23 : vector<1x128xf32> to vector<1x1x128xf32>
    %25 = vector.broadcast %24 : vector<1x1x128xf32> to vector<1x16x128xf32>
    %26 = arith.addf %22, %25 : vector<1x16x128xf32>
    %cst_10 = arith.constant 0.000000e+00 : f32
    %27 = vector.broadcast %cst_10 : f32 to vector<1x8x128xf32>
    %c0_11 = arith.constant 0 : index
    %c0_12 = arith.constant 0 : index
    %c0_13 = arith.constant 0 : index
    %28 = vector.load %arg8[%c0_11, %c0_12, %c0_13] : memref<1x25x128xf32, #tpu.memory_space<vmem>>, vector<1x8x128xf32>
    tpu.vector_store %arg8[%c0_11, %c0_12, %c0_13], %27 {strides = array<i32>} : memref<1x25x128xf32, #tpu.memory_space<vmem>>, vector<1x8x128xf32>,
    %cst_14 = arith.constant 0.000000e+00 : f32
    %29 = vector.broadcast %cst_14 : f32 to vector<1x1x128xf32>
    %c0_15 = arith.constant 0 : index
    %c24 = arith.constant 24 : index
    %c0_16 = arith.constant 0 : index
    %30 = vector.load %arg8[%c0_15, %c24, %c0_16] : memref<1x25x128xf32, #tpu.memory_space<vmem>>, vector<1x1x128xf32>
    tpu.vector_store %arg8[%c0_15, %c24, %c0_16], %29 {strides = array<i32>} : memref<1x25x128xf32, #tpu.memory_space<vmem>>, vector<1x1x128xf32>,
    %c0_17 = arith.constant 0 : index
    %c8 = arith.constant 8 : index
    %c0_18 = arith.constant 0 : index
    %31 = vector.load %arg8[%c0_17, %c8, %c0_18] : memref<1x25x128xf32, #tpu.memory_space<vmem>>, vector<1x16x128xf32>
    tpu.vector_store %arg8[%c0_17, %c8, %c0_18], %26 {strides = array<i32>} : memref<1x25x128xf32, #tpu.memory_space<vmem>>, vector<1x16x128xf32>,
    %c0_19 = arith.constant 0 : index
    %c0_20 = arith.constant 0 : index
    %32 = vector.load %arg4[%c0_19, %c0_20] : memref<3x128xf32, #tpu.memory_space<vmem>>, vector<3x128xf32>
    %c0_21 = arith.constant 0 : index
    %c7 = arith.constant 7 : index
    %c0_22 = arith.constant 0 : index
    %33 = vector.load %arg8[%c0_21, %c7, %c0_22] : memref<1x25x128xf32, #tpu.memory_space<vmem>>, vector<1x16x128xf32>
    %34 = vector.extract_strided_slice %32 {offsets = [0, 0], sizes = [1, 128], strides = [1, 1]} : vector<3x128xf32> to vector<1x128xf32>
    %35 = vector.shape_cast %34 : vector<1x128xf32> to vector<128xf32>
    %36 = vector.shape_cast %35 : vector<128xf32> to vector<1x1x128xf32>
    %37 = vector.broadcast %36 : vector<1x1x128xf32> to vector<1x16x128xf32>
    %38 = arith.mulf %33, %37 : vector<1x16x128xf32>
    %c0_23 = arith.constant 0 : index
    %c8_24 = arith.constant 8 : index
    %c0_25 = arith.constant 0 : index
    %39 = vector.load %arg8[%c0_23, %c8_24, %c0_25] : memref<1x25x128xf32, #tpu.memory_space<vmem>>, vector<1x16x128xf32>
    %40 = vector.extract_strided_slice %32 {offsets = [1, 0], sizes = [1, 128], strides = [1, 1]} : vector<3x128xf32> to vector<1x128xf32>
    %41 = vector.shape_cast %40 : vector<1x128xf32> to vector<128xf32>
    %42 = vector.shape_cast %41 : vector<128xf32> to vector<1x1x128xf32>
    %43 = vector.broadcast %42 : vector<1x1x128xf32> to vector<1x16x128xf32>
    %44 = arith.mulf %39, %43 : vector<1x16x128xf32>
    %45 = arith.addf %38, %44 : vector<1x16x128xf32>
    %c0_26 = arith.constant 0 : index
    %c9 = arith.constant 9 : index
    %c0_27 = arith.constant 0 : index
    %46 = vector.load %arg8[%c0_26, %c9, %c0_27] : memref<1x25x128xf32, #tpu.memory_space<vmem>>, vector<1x16x128xf32>
    %47 = vector.extract_strided_slice %32 {offsets = [2, 0], sizes = [1, 128], strides = [1, 1]} : vector<3x128xf32> to vector<1x128xf32>
    %48 = vector.shape_cast %47 : vector<1x128xf32> to vector<128xf32>
    %49 = vector.shape_cast %48 : vector<128xf32> to vector<1x1x128xf32>
    %50 = vector.broadcast %49 : vector<1x1x128xf32> to vector<1x16x128xf32>
    %51 = arith.mulf %46, %50 : vector<1x16x128xf32>
    %52 = arith.addf %45, %51 : vector<1x16x128xf32>
    %c0_28 = arith.constant 0 : index
    %c0_29 = arith.constant 0 : index
    %53 = vector.load %arg5[%c0_28, %c0_29] : memref<128x128xbf16, #tpu.memory_space<vmem>>, vector<128x128xbf16>
    %54 = vector.shape_cast %52 : vector<1x16x128xf32> to vector<16x128xf32>
    %55 = arith.truncf %54 : vector<16x128xf32> to vector<16x128xbf16>
    %cst_30 = arith.constant dense<0.000000e+00> : vector<16x128xf32>
    %56 = tpu.matmul %55, %53, %cst_30 {dimension_numbers = #tpu.dot_dimension_numbers<[1], [0], [0], [1], [0, 0, 1, 1], [], []>} : vector<16x128xbf16>, vector<128x128xbf16>, vector<16x128xf32> -> vector<16x128xf32>
    %c0_31 = arith.constant 0 : index
    %c0_32 = arith.constant 0 : index
    %57 = vector.load %arg6[%c0_31, %c0_32] : memref<1x128xf32, #tpu.memory_space<vmem>>, vector<1x128xf32>
    %58 = vector.broadcast %57 : vector<1x128xf32> to vector<16x128xf32>
    %59 = arith.addf %56, %58 : vector<16x128xf32>
    %cst_33 = arith.constant 0.000000e+00 : f32
    %60 = vector.broadcast %cst_33 : f32 to vector<16x128xf32>
    %61 = arith.maximumf %59, %60 : vector<16x128xf32>
    %62 = vector.shape_cast %61 : vector<16x128xf32> to vector<1x16x128xf32>
    %c0_34 = arith.constant 0 : index
    %c0_35 = arith.constant 0 : index
    %c0_36 = arith.constant 0 : index
    %63 = vector.load %arg7[%c0_34, %c0_35, %c0_36] : memref<1x16x128xf32, #tpu.memory_space<vmem>>, vector<1x16x128xf32>
    tpu.vector_store %arg7[%c0_34, %c0_35, %c0_36], %62 {strides = array<i32>} : memref<1x16x128xf32, #tpu.memory_space<vmem>>, vector<1x16x128xf32>,
    return
  }
  func.func @transform_0(%arg0: i32) -> (i32, i32, i32) {
    %c0_i32 = arith.constant 0 : i32
    %c0_i32_0 = arith.constant 0 : i32
    %c0_i32_1 = arith.constant 0 : i32
    return %arg0, %c0_i32, %c0_i32_0 : i32, i32, i32
  }
  func.func @transform_1(%arg0: i32) -> (i32, i32) {
    %c0_i32 = arith.constant 0 : i32
    %c0_i32_0 = arith.constant 0 : i32
    %c0_i32_1 = arith.constant 0 : i32
    return %c0_i32, %c0_i32_0 : i32, i32
  }
  func.func @transform_2(%arg0: i32) -> (i32, i32) {
    %c0_i32 = arith.constant 0 : i32
    %c0_i32_0 = arith.constant 0 : i32
    %c0_i32_1 = arith.constant 0 : i32
    return %c0_i32, %c0_i32_0 : i32, i32
  }
  func.func @transform_3(%arg0: i32) -> (i32, i32) {
    %c0_i32 = arith.constant 0 : i32
    %c0_i32_0 = arith.constant 0 : i32
    %c0_i32_1 = arith.constant 0 : i32
    return %c0_i32, %c0_i32_0 : i32, i32
  }
  func.func @transform_4(%arg0: i32) -> (i32, i32) {
    %c0_i32 = arith.constant 0 : i32
    %c0_i32_0 = arith.constant 0 : i32
    %c0_i32_1 = arith.constant 0 : i32
    return %c0_i32, %c0_i32_0 : i32, i32
  }
  func.func @transform_5(%arg0: i32) -> (i32, i32) {
    %c0_i32 = arith.constant 0 : i32
    %c0_i32_0 = arith.constant 0 : i32
    %c0_i32_1 = arith.constant 0 : i32
    return %c0_i32, %c0_i32_0 : i32, i32
  }
  func.func @transform_6(%arg0: i32) -> (i32, i32, i32) {
    %c0_i32 = arith.constant 0 : i32
    %c0_i32_0 = arith.constant 0 : i32
    %c0_i32_1 = arith.constant 0 : i32
    return %arg0, %c0_i32, %c0_i32_0 : i32, i32, i32
  }
}

</mosaic_0001>

<llo_original>
// kernel: tpu_custom_call.1
$region0: #{tpu_custom_call.1}
  #allocation0 [shape = 'u32[]', space=smem, size = 0x4, offset = 0x4, fixed_abs, tag = 'smem constant byte address 0x4 - core index']
  #allocation1 [shape = 'u32[72,128]{1,0:T(1,128)}', space=vmem, size = 0x9000, scoped, tag = 'internal scratch']
  #allocation2 [shape = 'f32[1,25,128]{2,1,0:T(8,128)}', space=vmem, size = 0x4000, scoped, tag = 'scratch operand']
  %s0 = inlined_call_operand.hbm [shape: f32[4,16,128], index: 0, kind: input, shape index: {}]
  %s1 = inlined_call_operand.hbm [shape: f32[1,128], index: 1, kind: input, shape index: {}]
  %s2 = inlined_call_operand.vmem [shape: f32[1,128], index: 2, kind: input, shape index: {}]
  %s3 = inlined_call_operand.hbm [shape: f32[3,128], index: 3, kind: input, shape index: {}]
  %s4 = inlined_call_operand.hbm [shape: bf16[128,128], index: 4, kind: input, shape index: {}]
  %s5 = inlined_call_operand.vmem [shape: f32[1,128], index: 5, kind: input, shape index: {}]
  %s6 = inlined_call_operand.hbm [shape: f32[4,16,128], index: 6, kind: output, shape index: {}]
  %s7 = sld [smem:[#allocation0]]
  $region73: #{tpu_custom_call.1} parent=0
    _
  %s9 = ssub.s32 1, %s7
  %s10 = scalar_select 0, %s9, %s7
  $region1: #{tpu_custom_call.1} parent=0
    #allocation3 [shape = 'u8[16384]{0}', space=vmem, size = 0x4000, scoped, tag = 'input window, operand 0']
    #allocation4 [shape = 's32[2]{0}', space=sflag, size = 0x8, scoped, tag = 'scoped memory for tpu_custom_call.1']
    #allocation5 [shape = 's32[2]{0}', space=sflag, size = 0x8, scoped, tag = 'scoped memory for tpu_custom_call.1']
    #allocation6 [shape = 'u8[512]{0}', space=vmem, size = 0x400, scoped, tag = 'input window, operand 1, single buffered']
    #allocation7 [shape = 's32[1]{0}', space=sflag, size = 0x4, scoped, tag = 'scoped memory for tpu_custom_call.1']
    #allocation8 [shape = 'u8[2048]{0}', space=vmem, size = 0x800, scoped, tag = 'input window, operand 3, single buffered']
    #allocation9 [shape = 'u8[32768]{0}', space=vmem, size = 0x8000, scoped, tag = 'input window, operand 4, single buffered']
    #allocation10 [shape = 's32[1]{0}', space=sflag, size = 0x4, scoped, tag = 'scoped memory for tpu_custom_call.1']
    #allocation11 [shape = 'u8[16384]{0}', space=vmem, size = 0x4000, scoped, tag = 'output window, operand 0']
    %11 = vsyncpa [#allocation4], 0
    %s12 = scalar_lea.sflag [#allocation4], 1
    %13 = vsyncpa %s12, 0
    %14 = vsyncpa [#allocation7], 0
    %15 = vsyncpa [#allocation10], 0
    %16 = vsyncpa [#allocation5], 0
    %s17 = scalar_lea.sflag [#allocation5], 1
    %18 = vsyncpa %s17, 0
    loop: start=0, step=1, limit=6
    $region2: #{tpu_custom_call.1} parent=1 // loop_pre_header
      _
    $region3: #{tpu_custom_call.1} parent=1 // loop_header
      %s20 = sphi 0, %s24
      %p21 = scmp.ge.s32.totalorder %s20, 6
      %s30 = sphi 0, %s32
      %s33 = sphi 0, %s30
      %s34 = sphi 0, %s33
      %s50 = sphi 0, %s34
      %s54 = sphi 0, %s54
      %s56 = sphi 0, %s54
      %s57 = sphi 0, %s56
      %s71 = sphi 0, %s57
      %s75 = sphi 0, %s75
      %s77 = sphi 0, %s75
      %s78 = sphi 0, %s77
      %s92 = sphi 0, %s78
      %s96 = sphi 0, %s96
      %s98 = sphi 0, %s96
      %s99 = sphi 0, %s98
      %s113 = sphi 0, %s99
      %s117 = sphi 0, %s117
      %s119 = sphi 0, %s117
      %s120 = sphi 0, %s119
      %s134 = sphi 0, %s120
      %s138 = sphi 0, %s138
      %s140 = sphi 0, %s138
      %s141 = sphi 0, %s140
      %s155 = sphi 0, %s141
      %s161 = sphi 0, %s163
      %s164 = sphi 0, %s161
      %s165 = sphi 0, %s164
      %s181 = sphi 0, %s165
    $region4: #{tpu_custom_call.1} parent=1 // loop_header_branch
      %23 = sbr.rel (%p21) target = $region8
    $region5: #{tpu_custom_call.1} parent=1 // loop_body
      %s25 = ssub.s32 %s20, 1
      %s26 = ssub.s32 %s20, 2
      %s27 = sadd.s32 %s20, 1
      %s28 = ssub.s32 %s20, %s27
      %p29 = scmp.eq.s32.totalorder %s28, 0
      %s31 = sadd.s32 %s30, 1
      %s32 = scalar_select %p29, %s30, %s31
      %p35 = pneg %p29
      %p36 = scmp.eq.s32.totalorder %s20, 3
      %p37 = por %p35, %p36
      %p38 = scmp.ne.s32.totalorder %s30, %s33
      %p39 = scmp.eq.s32.totalorder %s20, 0
      %p40 = por %p38, %p39
      %p41 = scmp.ne.s32.totalorder %s30, %s33
      %p42 = scmp.eq.s32.totalorder %s25, 3
      %p43 = por %p41, %p42
      %p44 = scmp.ne.s32.totalorder %s33, %s34
      %p45 = scmp.eq.s32.totalorder %s25, 0
      %p46 = por %p44, %p45
      %p47 = scmp.ne.s32.totalorder %s33, %s34
      %p48 = scmp.eq.s32.totalorder %s26, 3
      %p49 = por %p47, %p48
      %p51 = scmp.ne.s32.totalorder %s34, %s50
      %p52 = scmp.eq.s32.totalorder %s26, 0
      %p53 = por %p51, %p52
      %s55 = sadd.s32 %s54, 1
      %p58 = scmp.eq.s32.totalorder %s20, 3
      %p59 = scmp.ne.s32.totalorder %s54, %s56
      %p60 = scmp.eq.s32.totalorder %s20, 0
      %p61 = por %p59, %p60
      %p62 = scmp.ne.s32.totalorder %s54, %s56
      %p63 = scmp.eq.s32.totalorder %s25, 3
      %p64 = por %p62, %p63
      %p65 = scmp.ne.s32.totalorder %s56, %s57
      %p66 = scmp.eq.s32.totalorder %s25, 0
      %p67 = por %p65, %p66
      %p68 = scmp.ne.s32.totalorder %s56, %s57
      %p69 = scmp.eq.s32.totalorder %s26, 3
      %p70 = por %p68, %p69
      %p72 = scmp.ne.s32.totalorder %s57, %s71
      %p73 = scmp.eq.s32.totalorder %s26, 0
      %p74 = por %p72, %p73
      %s76 = sadd.s32 %s75, 1
      %p79 = scmp.eq.s32.totalorder %s20, 3
      %p80 = scmp.ne.s32.totalorder %s75, %s77
      %p81 = scmp.eq.s32.totalorder %s20, 0
      %p82 = por %p80, %p81
      %p83 = scmp.ne.s32.totalorder %s75, %s77
      %p84 = scmp.eq.s32.totalorder %s25, 3
      %p85 = por %p83, %p84
      %p86 = scmp.ne.s32.totalorder %s77, %s78
      %p87 = scmp.eq.s32.totalorder %s25, 0
      %p88 = por %p86, %p87
      %p89 = scmp.ne.s32.totalorder %s77, %s78
      %p90 = scmp.eq.s32.totalorder %s26, 3
      %p91 = por %p89, %p90
      %p93 = scmp.ne.s32.totalorder %s78, %s92
      %p94 = scmp.eq.s32.totalorder %s26, 0
      %p95 = por %p93, %p94
      %s97 = sadd.s32 %s96, 1
      %p100 = scmp.eq.s32.totalorder %s20, 3
      %p101 = scmp.ne.s32.totalorder %s96, %s98
      %p102 = scmp.eq.s32.totalorder %s20, 0
      %p103 = por %p101, %p102
      %p104 = scmp.ne.s32.totalorder %s96, %s98
      %p105 = scmp.eq.s32.totalorder %s25, 3
      %p106 = por %p104, %p105
      %p107 = scmp.ne.s32.totalorder %s98, %s99
      %p108 = scmp.eq.s32.totalorder %s25, 0
      %p109 = por %p107, %p108
      %p110 = scmp.ne.s32.totalorder %s98, %s99
      %p111 = scmp.eq.s32.totalorder %s26, 3
      %p112 = por %p110, %p111
      %p114 = scmp.ne.s32.totalorder %s99, %s113
      %p115 = scmp.eq.s32.totalorder %s26, 0
      %p116 = por %p114, %p115
      %s118 = sadd.s32 %s117, 1
      %p121 = scmp.eq.s32.totalorder %s20, 3
      %p122 = scmp.ne.s32.totalorder %s117, %s119
      %p123 = scmp.eq.s32.totalorder %s20, 0
      %p124 = por %p122, %p123
      %p125 = scmp.ne.s32.totalorder %s117, %s119
      %p126 = scmp.eq.s32.totalorder %s25, 3
      %p127 = por %p125, %p126
      %p128 = scmp.ne.s32.totalorder %s119, %s120
      %p129 = scmp.eq.s32.totalorder %s25, 0
      %p130 = por %p128, %p129
      %p131 = scmp.ne.s32.totalorder %s119, %s120
      %p132 = scmp.eq.s32.totalorder %s26, 3
      %p133 = por %p131, %p132
      %p135 = scmp.ne.s32.totalorder %s120, %s134
      %p136 = scmp.eq.s32.totalorder %s26, 0
      %p137 = por %p135, %p136
      %s139 = sadd.s32 %s138, 1
      %p142 = scmp.eq.s32.totalorder %s20, 3
      %p143 = scmp.ne.s32.totalorder %s138, %s140
      %p144 = scmp.eq.s32.totalorder %s20, 0
      %p145 = por %p143, %p144
      %p146 = scmp.ne.s32.totalorder %s138, %s140
      %p147 = scmp.eq.s32.totalorder %s25, 3
      %p148 = por %p146, %p147
      %p149 = scmp.ne.s32.totalorder %s140, %s141
      %p150 = scmp.eq.s32.totalorder %s25, 0
      %p151 = por %p149, %p150
      %p152 = scmp.ne.s32.totalorder %s140, %s141
      %p153 = scmp.eq.s32.totalorder %s26, 3
      %p154 = por %p152, %p153
      %p156 = scmp.ne.s32.totalorder %s141, %s155
      %p157 = scmp.eq.s32.totalorder %s26, 0
      %p158 = por %p156, %p157
      %s159 = ssub.s32 %s20, %s27
      %p160 = scmp.eq.s32.totalorder %s159, 0
      %s162 = sadd.s32 %s161, 1
      %s163 = scalar_select %p160, %s161, %s162
      %p166 = pneg %p160
      %p167 = scmp.eq.s32.totalorder %s20, 3
      %p168 = por %p166, %p167
      %p169 = scmp.ne.s32.totalorder %s161, %s164
      %p170 = scmp.eq.s32.totalorder %s20, 0
      %p171 = por %p169, %p170
      %p172 = scmp.ne.s32.totalorder %s161, %s164
      %p173 = scmp.eq.s32.totalorder %s25, 3
      %p174 = por %p172, %p173
      %p175 = scmp.ne.s32.totalorder %s164, %s165
      %p176 = scmp.eq.s32.totalorder %s25, 0
      %p177 = por %p175, %p176
      %p178 = scmp.ne.s32.totalorder %s164, %s165
      %p179 = scmp.eq.s32.totalorder %s26, 3
      %p180 = por %p178, %p179
      %p182 = scmp.ne.s32.totalorder %s165, %s181
      %p183 = scmp.eq.s32.totalorder %s26, 0
      %p184 = por %p182, %p183
      %p185 = scmp.le.s32.totalorder 1, %s20
      %p186 = scmp.lt.s32.totalorder %s20, 5
      %p187 = pnand %p185, %p186
      %p188 = pneg %p187
      // Predicated region
      $region9: #{tpu_custom_call.1} parent=5 // pred_check
        _
      $region10: #{tpu_custom_call.1} parent=5 // pred_check_branch
        %190 = sbr.rel (%p187) target = $region12
      $region11: #{tpu_custom_call.1} parent=5 // pred_region
        %s191 = ssub.s32 %s20, 1
        // Predicated region
        $region13: #{tpu_custom_call.1} parent=11 // pred_check
          %p192 = pneg %p67
        $region14: #{tpu_custom_call.1} parent=11 // pred_check_branch
          %194 = sbr.rel (%p192) target = $region16
        $region15: #{tpu_custom_call.1} parent=11 // pred_region
          %196 = vsyncadd [#allocation7], 0
          %s198 = sshll.u32 %s1, 4
          %s199 = int_to_ptr.hbm [resolvable:$true] %s198
          %s200 = sshll.u32 [#allocation6], 4
          %s201 = int_to_ptr.vmem [resolvable:$true] %s200
          %203 = dma.hbm_to_vmem [thread:$0]  %s199, 16, %s201, [#allocation7]
        $region16: #{tpu_custom_call.1} parent=11 // pred_fallthru
          _
        // Predicated region
        $region17: #{tpu_custom_call.1} parent=11 // pred_check
          %p204 = pneg %p88
        $region18: #{tpu_custom_call.1} parent=11 // pred_check_branch
          %206 = sbr.rel (%p204) target = $region20
        $region19: #{tpu_custom_call.1} parent=11 // pred_region
          _
        $region20: #{tpu_custom_call.1} parent=11 // pred_fallthru
          _
        // Predicated region
        $region21: #{tpu_custom_call.1} parent=11 // pred_check
          %p207 = pneg %p109
        $region22: #{tpu_custom_call.1} parent=11 // pred_check_branch
          %209 = sbr.rel (%p207) target = $region24
        $region23: #{tpu_custom_call.1} parent=11 // pred_region
          %211 = vsyncadd [#allocation7], 0
          %s213 = sshll.u32 %s3, 4
          %s214 = int_to_ptr.hbm [resolvable:$true] %s213
          %s215 = sshll.u32 [#allocation8], 4
          %s216 = int_to_ptr.vmem [resolvable:$true] %s215
          %218 = dma.hbm_to_vmem [thread:$0]  %s214, 64, %s216, [#allocation7]
        $region24: #{tpu_custom_call.1} parent=11 // pred_fallthru
          _
        // Predicated region
        $region25: #{tpu_custom_call.1} parent=11 // pred_check
          %p219 = pneg %p130
        $region26: #{tpu_custom_call.1} parent=11 // pred_check_branch
          %221 = sbr.rel (%p219) target = $region28
        $region27: #{tpu_custom_call.1} parent=11 // pred_region
          %223 = vsyncadd [#allocation10], 0
          %s224 = sshll.u32 %s4, 4
          %s225 = int_to_ptr.hbm [resolvable:$true] %s224
          %s226 = sshll.u32 [#allocation9], 4
          %s227 = int_to_ptr.vmem [resolvable:$true] %s226
          %232 = dma.hbm_to_vmem [thread:$0]  %s225, 1024, %s227, [#allocation10], 64, 64, 4
        $region28: #{tpu_custom_call.1} parent=11 // pred_fallthru
          _
        // Predicated region
        $region29: #{tpu_custom_call.1} parent=11 // pred_check
          %p233 = pneg %p151
        $region30: #{tpu_custom_call.1} parent=11 // pred_check_branch
          %235 = sbr.rel (%p233) target = $region32
        $region31: #{tpu_custom_call.1} parent=11 // pred_region
          _
        $region32: #{tpu_custom_call.1} parent=11 // pred_fallthru
          _
      $region12: #{tpu_custom_call.1} parent=5 // pred_fallthru
        _
      %p236 = scmp.lt.s32.totalorder %s20, 4
      // Predicated region
      $region33: #{tpu_custom_call.1} parent=5 // pred_check
        %p237 = pneg %p236
      $region34: #{tpu_custom_call.1} parent=5 // pred_check_branch
        %239 = sbr.rel (%p237) target = $region36
      $region35: #{tpu_custom_call.1} parent=5 // pred_region
        // Predicated region
        $region37: #{tpu_custom_call.1} parent=35 // pred_check
          %p240 = pneg %p40
        $region38: #{tpu_custom_call.1} parent=35 // pred_check_branch
          %242 = sbr.rel (%p240) target = $region40
        $region39: #{tpu_custom_call.1} parent=35 // pred_region
          %s243 = sand.u32 %s30, 1
          %s244 = scalar_lea.sflag [#allocation4], %s243
          %s245 = sand.u32 %s30, 1
          %s246 = smul.addr %s245, 16
          %s247 = scalar_lea.vmem [#allocation3], %s246
          %249 = vsyncadd %s244, 0
          %s250 = smul.addr %s20, 2
          %s251 = smul.addr %s250, 8
          %s252 = scalar_lea.hbm %s0, %s251
          %s253 = sshll.u32 %s252, 4
          %s254 = int_to_ptr.hbm [resolvable:$true] %s253
          %s255 = sshll.u32 %s247, 4
          %s256 = int_to_ptr.vmem [resolvable:$true] %s255
          %261 = dma.hbm_to_vmem [thread:$0]  %s254, 256, %s256, %s244, 128, 128, 8
        $region40: #{tpu_custom_call.1} parent=35 // pred_fallthru
          _
      $region36: #{tpu_custom_call.1} parent=5 // pred_fallthru
        _
      %p262 = scmp.le.s32.totalorder 1, %s20
      %p263 = scmp.lt.s32.totalorder %s20, 5
      %p264 = pnand %p262, %p263
      %p265 = pneg %p264
      // Predicated region
      $region41: #{tpu_custom_call.1} parent=5 // pred_check
        _
      $region42: #{tpu_custom_call.1} parent=5 // pred_check_branch
        %267 = sbr.rel (%p264) target = $region44
      $region43: #{tpu_custom_call.1} parent=5 // pred_region
        %s268 = ssub.s32 %s20, 1
        %s269 = sand.u32 %s33, 1
        %s270 = scalar_lea.sflag [#allocation4], %s269
        %s271 = sand.u32 %s33, 1
        %s272 = smul.addr %s271, 16
        %s273 = scalar_lea.vmem [#allocation3], %s272
        // Predicated region
        $region45: #{tpu_custom_call.1} parent=43 // pred_check
          %p274 = pneg %p46
        $region46: #{tpu_custom_call.1} parent=43 // pred_check_branch
          %276 = sbr.rel (%p274) target = $region48
        $region47: #{tpu_custom_call.1} parent=43 // pred_region
          %278 = dma.done %s270, 256
        $region48: #{tpu_custom_call.1} parent=43 // pred_fallthru
          _
        // Predicated region
        $region49: #{tpu_custom_call.1} parent=43 // pred_check
          %p279 = pneg %p67
        $region50: #{tpu_custom_call.1} parent=43 // pred_check_branch
          %281 = sbr.rel (%p279) target = $region52
        $region51: #{tpu_custom_call.1} parent=43 // pred_region
          %283 = dma.done [#allocation7], 16
        $region52: #{tpu_custom_call.1} parent=43 // pred_fallthru
          _
        // Predicated region
        $region53: #{tpu_custom_call.1} parent=43 // pred_check
          %p284 = pneg %p109
        $region54: #{tpu_custom_call.1} parent=43 // pred_check_branch
          %286 = sbr.rel (%p284) target = $region56
        $region55: #{tpu_custom_call.1} parent=43 // pred_region
          %288 = dma.done [#allocation7], 64
        $region56: #{tpu_custom_call.1} parent=43 // pred_fallthru
          _
        // Predicated region
        $region57: #{tpu_custom_call.1} parent=43 // pred_check
          %p289 = pneg %p130
        $region58: #{tpu_custom_call.1} parent=43 // pred_check_branch
          %291 = sbr.rel (%p289) target = $region60
        $region59: #{tpu_custom_call.1} parent=43 // pred_region
          %293 = dma.done [#allocation10], 1024
        $region60: #{tpu_custom_call.1} parent=43 // pred_fallthru
          _
        %s294 = sand.u32 %s33, 1
        %s295 = scalar_lea.sflag [#allocation4], %s294
        %s296 = sand.u32 %s33, 1
        %s297 = smul.addr %s296, 16
        %s298 = scalar_lea.vmem [#allocation3], %s297
        %p299 = pneg %p46
        %p300 = pneg %p43
        %p301 = pneg %p67
        %p302 = pneg %p64
        %p303 = pneg %p88
        %p304 = pneg %p85
        %p305 = pneg %p109
        %p306 = pneg %p106
        %p307 = pneg %p130
        %p308 = pneg %p127
        %p309 = pneg %p151
        %p310 = pneg %p148
        %p311 = pneg %p177
        %p312 = pneg %p174
        %s313 = sand.u32 %s164, 1
        %s314 = scalar_lea.sflag [#allocation5], %s313
        %s315 = sand.u32 %s164, 1
        %s316 = smul.addr %s315, 16
        %s317 = scalar_lea.vmem [#allocation11], %s316
        %v318 = vld [vmem:[%s273] sm:$0xff]
        %v319 = vld [vmem:[%s273 + $0x8] sm:$0xff]
        %320 = vadd.xlane.f32.xlu0 %v318
        %v321 = vpop.xlane.xlu0 %320
        %322 = vadd.xlane.f32.xlu0 %v319
        %v323 = vpop.xlane.xlu0 %322
        %v324 = vmul.f32 %v321, 0.0078125
        %v325 = vmul.f32 %v323, 0.0078125
        %v326 = vmul.f32 %v318, %v318
        %v327 = vmul.f32 %v319, %v319
        %328 = vadd.xlane.f32.xlu0 %v326
        %v329 = vpop.xlane.xlu0 %328
        %330 = vadd.xlane.f32.xlu0 %v327
        %v331 = vpop.xlane.xlu0 %330
        %v332 = vmul.f32 %v329, 0.0078125
        %v333 = vmul.f32 %v331, 0.0078125
        %v334 = vmul.f32 %v324, %v324
        %v335 = vmul.f32 %v325, %v325
        %v336 = vsub.f32 %v332, %v334
        %v337 = vsub.f32 %v333, %v335
        %v338 = vsub.f32 %v318, %v324
        %v339 = vsub.f32 %v319, %v325
        %v340 = vadd.f32 %v336, 1e-05
        %v341 = vadd.f32 %v337, 1e-05
        %v342 = vrsqrt.pop %v340
        %v343 = vmul.f32 %v342, %v340
        %v344 = vmul.f32 %v343, %v342
        %v345 = vmul.f32 0.5, %v344
        %v346 = vsub.f32 1.5, %v345
        %v347 = vmul.f32 %v342, %v346
        %vm348 = vweird.f32 %v340
        %vm349 = vweird.f32 %v342
        %vm350 = vmor %vm348, %vm349
        %v351 = vsel %vm350, %v342, %v347
        %v352 = vrsqrt.pop %v341
        %v353 = vmul.f32 %v352, %v341
        %v354 = vmul.f32 %v353, %v352
        %v355 = vmul.f32 0.5, %v354
        %v356 = vsub.f32 1.5, %v355
        %v357 = vmul.f32 %v352, %v356
        %vm358 = vweird.f32 %v341
        %vm359 = vweird.f32 %v352
        %vm360 = vmor %vm358, %vm359
        %v361 = vsel %vm360, %v352, %v357
        %v362 = vmul.f32 %v338, %v351
        %v363 = vmul.f32 %v339, %v361
        %v364 = vld [vmem:[#allocation6] sm:$0x1]
        %v366 = vperm.slane %v364, 0
        %v368 = vmul.f32 %v362, %v366
        %v369 = vmul.f32 %v363, %v366
        %v370 = vld [vmem:[%s2] sm:$0x1]
        %v372 = vperm.slane %v370, 0
        %v374 = vadd.f32 %v368, %v372
        %v375 = vadd.f32 %v369, %v372
        %376 = vst [vmem:[#allocation2] sm:$0xff] 0.0
        %377 = vst [vmem:[#allocation2 + $0x18] sm:$0x1] 0.0
        %378 = vst [vmem:[#allocation2 + $0x8] sm:$0xff] %v374
        %379 = vst [vmem:[#allocation2 + $0x10] sm:$0xff] %v375
        %v380 = vld [vmem:[#allocation8] sm:$0x7]
        %v381 = vld [vmem:[#allocation2 + $0x7] sm:$0xff]
        %v382 = vld [vmem:[#allocation2 + $0xf] sm:$0xff]
        %v383 = vperm.slane %v380, 0
        %v384 = vmul.f32 %v381, %v383
        %v385 = vmul.f32 %v382, %v383
        %v386 = vld [vmem:[#allocation2 + $0x8] sm:$0xff]
        %v387 = vld [vmem:[#allocation2 + $0x10] sm:$0xff]
        %v388 = vperm.slane %v380, 1
        %v389 = vmul.f32 %v386, %v388
        %v390 = vmul.f32 %v387, %v388
        %v391 = vadd.f32 %v384, %v389
        %v392 = vadd.f32 %v385, %v390
        %v393 = vld [vmem:[#allocation2 + $0x9] sm:$0xff]
        %v394 = vld [vmem:[#allocation2 + $0x11] sm:$0xff]
        %v395 = vperm.slane %v380, 2
        %v396 = vmul.f32 %v393, %v395
        %v397 = vmul.f32 %v394, %v395
        %v398 = vadd.f32 %v391, %v396
        %v399 = vadd.f32 %v392, %v397
        %v400 = vld [vmem:[#allocation9] sm:$0xf]
        %v401 = vld [vmem:[#allocation9 + $0x4] sm:$0xf]
        %v402 = vld [vmem:[#allocation9 + $0x8] sm:$0xf]
        %v403 = vld [vmem:[#allocation9 + $0xc] sm:$0xf]
        %v404 = vld [vmem:[#allocation9 + $0x10] sm:$0xf]
        %v405 = vld [vmem:[#allocation9 + $0x14] sm:$0xf]
        %v406 = vld [vmem:[#allocation9 + $0x18] sm:$0xf]
        %v407 = vld [vmem:[#allocation9 + $0x1c] sm:$0xf]
        %v408 = vld [vmem:[#allocation9 + $0x20] sm:$0xf]
        %v409 = vld [vmem:[#allocation9 + $0x24] sm:$0xf]
        %v410 = vld [vmem:[#allocation9 + $0x28] sm:$0xf]
        %v411 = vld [vmem:[#allocation9 + $0x2c] sm:$0xf]
        %v412 = vld [vmem:[#allocation9 + $0x30] sm:$0xf]
        %v413 = vld [vmem:[#allocation9 + $0x34] sm:$0xf]
        %v414 = vld [vmem:[#allocation9 + $0x38] sm:$0xf]
        %v415 = vld [vmem:[#allocation9 + $0x3c] sm:$0xf]
        %v416 = vpack.c.bf16 %v399, %v398
        %v417 = vld [vmem:[%s5] sm:$0x1]
        %v419 = vperm.slane %v417, 0
        %v437 = vunpack.c.l.b16 %v400
        %v438 = vunpack.c.l.b16 %v401
        %v439 = vunpack.c.l.b16 %v402
        %v440 = vunpack.c.l.b16 %v403
        %v441 = vunpack.c.l.b16 %v404
        %v442 = vunpack.c.l.b16 %v405
        %v443 = vunpack.c.l.b16 %v406
        %v444 = vunpack.c.l.b16 %v407
        %v445 = vunpack.c.l.b16 %v408
        %v446 = vunpack.c.l.b16 %v409
        %v447 = vunpack.c.l.b16 %v410
        %v448 = vunpack.c.l.b16 %v411
        %v449 = vunpack.c.l.b16 %v412
        %v450 = vunpack.c.l.b16 %v413
        %v451 = vunpack.c.l.b16 %v414
        %v452 = vunpack.c.l.b16 %v415
        %v453 = vpack.c.b16 %v438, %v437
        %v454 = vpack.c.b16 %v440, %v439
        %v455 = vpack.c.b16 %v442, %v441
        %v456 = vpack.c.b16 %v444, %v443
        %v457 = vpack.c.b16 %v446, %v445
        %v458 = vpack.c.b16 %v448, %v447
        %v459 = vpack.c.b16 %v450, %v449
        %v460 = vpack.c.b16 %v452, %v451
        %469 = vmatpush.bf16.msra.mxu0 %v460
        %470 = vmatpush.bf16.msra.mxu0 %v459
        %471 = vmatpush.bf16.msra.mxu0 %v458
        %472 = vmatpush.bf16.msra.mxu0 %v457
        %473 = vmatpush.bf16.msra.mxu0 %v456
        %474 = vmatpush.bf16.msra.mxu0 %v455
        %475 = vmatpush.bf16.msra.mxu0 %v454
        %476 = vmatpush.bf16.msra.mxu0 %v453
        %477 = vmatmul.bf16.gmra.mxu0 %v416
        %v478 = vpop.f32.mrf.mxu0
        %v479 = vadd.f32 %v419, %v478
        %v480 = vpop.f32.mrf.mxu0
        %v481 = vadd.f32 %v419, %v480
        %482 = vdwg.mxu0
        %v483 = vmax.f32 %v479, 0.0
        %v484 = vmax.f32 %v481, 0.0
        %485 = vst [vmem:[%s317] sm:$0xff] %v483
        %486 = vst [vmem:[%s317 + $0x8] sm:$0xff] %v484
        %s487 = sand.u32 %s164, 1
        %s488 = scalar_lea.sflag [#allocation5], %s487
        %s489 = sand.u32 %s164, 1
        %s490 = smul.addr %s489, 16
        %s491 = scalar_lea.vmem [#allocation11], %s490
        // Predicated region
        $region61: #{tpu_custom_call.1} parent=43 // pred_check
          %p492 = pneg %p174
        $region62: #{tpu_custom_call.1} parent=43 // pred_check_branch
          %494 = sbr.rel (%p492) target = $region64
        $region63: #{tpu_custom_call.1} parent=43 // pred_region
          %496 = vsyncadd %s488, 0
          %s497 = smul.addr %s25, 2
          %s498 = smul.addr %s497, 8
          %s499 = scalar_lea.hbm %s6, %s498
          %s500 = sshll.u32 %s491, 4
          %s501 = int_to_ptr.vmem [resolvable:$true] %s500
          %s502 = sshll.u32 %s499, 4
          %s503 = int_to_ptr.hbm [resolvable:$true] %s502
          %508 = dma.vmem_to_hbm [thread:$0]  %s501, 256, %s503, %s488, 128, 128, 8
        $region64: #{tpu_custom_call.1} parent=43 // pred_fallthru
          _
      $region44: #{tpu_custom_call.1} parent=5 // pred_fallthru
        _
      %p509 = scmp.le.s32.totalorder 2, %s20
      // Predicated region
      $region65: #{tpu_custom_call.1} parent=5 // pred_check
        %p510 = pneg %p509
      $region66: #{tpu_custom_call.1} parent=5 // pred_check_branch
        %512 = sbr.rel (%p510) target = $region68
      $region67: #{tpu_custom_call.1} parent=5 // pred_region
        %s513 = ssub.s32 %s20, 2
        // Predicated region
        $region69: #{tpu_custom_call.1} parent=67 // pred_check
          %p514 = pneg %p180
        $region70: #{tpu_custom_call.1} parent=67 // pred_check_branch
          %516 = sbr.rel (%p514) target = $region72
        $region71: #{tpu_custom_call.1} parent=67 // pred_region
          %s517 = sand.u32 %s165, 1
          %s518 = scalar_lea.sflag [#allocation5], %s517
          %s519 = sand.u32 %s165, 1
          %s520 = smul.addr %s519, 16
          %s521 = scalar_lea.vmem [#allocation11], %s520
          %523 = dma.done %s518, 256
        $region72: #{tpu_custom_call.1} parent=67 // pred_fallthru
          _
      $region68: #{tpu_custom_call.1} parent=5 // pred_fallthru
        _
    $region6: #{tpu_custom_call.1} parent=1 // loop_footer
      %s24 = sadd.s32 1, %s20
    $region7: #{tpu_custom_call.1} parent=1 // loop_footer_branch
      %19 = sbr.rel target = $region3
    $region8: #{tpu_custom_call.1} parent=1 // loop_exit
      _
    %524 = vsyncpa [#allocation4], 1
    %s525 = scalar_lea.sflag [#allocation4], 1
    %526 = vsyncpa %s525, 1
    %527 = vsyncpa [#allocation7], 1
    %528 = vsyncpa [#allocation10], 1
    %529 = vsyncpa [#allocation5], 1
    %s530 = scalar_lea.sflag [#allocation5], 1
    %531 = vsyncpa %s530, 1

// kernel: tpu_custom_call.1
$region0: #{tpu_custom_call.1}
  #allocation0 [shape = 'u32[]', space=smem, size = 0x4, offset = 0x4, fixed_abs, tag = 'smem constant byte address 0x4 - core index']
  #allocation1 [shape = 'u32[72,128]{1,0:T(1,128)}', space=vmem, size = 0x9000, scoped, tag = 'internal scratch']
  #allocation2 [shape = 'f32[1,25,128]{2,1,0:T(8,128)}', space=vmem, size = 0x4000, scoped, tag = 'scratch operand']
  %s0 = inlined_call_operand.hbm [shape: f32[4,16,128], index: 0, kind: input, shape index: {}]
  %s1 = inlined_call_operand.hbm [shape: f32[1,128], index: 1, kind: input, shape index: {}]
  %s2 = inlined_call_operand.vmem [shape: f32[1,128], index: 2, kind: input, shape index: {}]
  %s3 = inlined_call_operand.hbm [shape: f32[3,128], index: 3, kind: input, shape index: {}]
  %s4 = inlined_call_operand.hbm [shape: bf16[128,128], index: 4, kind: input, shape index: {}]
  %s5 = inlined_call_operand.vmem [shape: f32[1,128], index: 5, kind: input, shape index: {}]
  %s6 = inlined_call_operand.hbm [shape: f32[4,16,128], index: 6, kind: output, shape index: {}]
  %s7 = sld [smem:[#allocation0]]
  $region73: #{tpu_custom_call.1} parent=0
    _
  %s9 = ssub.s32 1, %s7
  %s10 = scalar_select 0, %s9, %s7
  $region1: #{tpu_custom_call.1} parent=0
    #allocation3 [shape = 'u8[16384]{0}', space=vmem, size = 0x4000, scoped, tag = 'input window, operand 0']
    #allocation4 [shape = 's32[2]{0}', space=sflag, size = 0x8, scoped, tag = 'scoped memory for tpu_custom_call.1']
    #allocation5 [shape = 's32[2]{0}', space=sflag, size = 0x8, scoped, tag = 'scoped memory for tpu_custom_call.1']
    #allocation6 [shape = 'u8[512]{0}', space=vmem, size = 0x400, scoped, tag = 'input window, operand 1, single buffered']
    #allocation7 [shape = 's32[1]{0}', space=sflag, size = 0x4, scoped, tag = 'scoped memory for tpu_custom_call.1']
    #allocation8 [shape = 'u8[2048]{0}', space=vmem, size = 0x800, scoped, tag = 'input window, operand 3, single buffered']
    #allocation9 [shape = 'u8[32768]{0}', space=vmem, size = 0x8000, scoped, tag = 'input window, operand 4, single buffered']
    #allocation10 [shape = 's32[1]{0}', space=sflag, size = 0x4, scoped, tag = 'scoped memory for tpu_custom_call.1']
    #allocation11 [shape = 'u8[16384]{0}', space=vmem, size = 0x4000, scoped, tag = 'output window, operand 0']
    %11 = vsyncpa [#allocation4], 0
    %s12 = scalar_lea.sflag [#allocation4], 1
    %13 = vsyncpa %s12, 0
    %14 = vsyncpa [#allocation7], 0
    %15 = vsyncpa [#allocation10], 0
    %16 = vsyncpa [#allocation5], 0
    %s17 = scalar_lea.sflag [#allocation5], 1
    %18 = vsyncpa %s17, 0
    loop: start=0, step=1, limit=6
    $region2: #{tpu_custom_call.1} parent=1 // loop_pre_header
      _
    $region3: #{tpu_custom_call.1} parent=1 // loop_header
      %s20 = sphi 0, %s24
      %p21 = scmp.ge.s32.totalorder %s20, 6
      %s30 = sphi 0, %s32
      %s33 = sphi 0, %s30
      %s34 = sphi 0, %s33
      %s50 = sphi 0, %s34
      %s54 = sphi 0, %s54
      %s56 = sphi 0, %s54
      %s57 = sphi 0, %s56
      %s71 = sphi 0, %s57
      %s75 = sphi 0, %s75
      %s77 = sphi 0, %s75
      %s78 = sphi 0, %s77
      %s92 = sphi 0, %s78
      %s96 = sphi 0, %s96
      %s98 = sphi 0, %s96
      %s99 = sphi 0, %s98
      %s113 = sphi 0, %s99
      %s117 = sphi 0, %s117
      %s119 = sphi 0, %s117
      %s120 = sphi 0, %s119
      %s134 = sphi 0, %s120
      %s138 = sphi 0, %s138
      %s140 = sphi 0, %s138
      %s141 = sphi 0, %s140
      %s155 = sphi 0, %s141
      %s161 = sphi 0, %s163
      %s164 = sphi 0, %s161
      %s165 = sphi 0, %s164
      %s181 = sphi 0, %s165
    $region4: #{tpu_custom_call.1} parent=1 // loop_header_branch
      %23 = sbr.rel (%p21) target = $region8
    $region5: #{tpu_custom_call.1} parent=1 // loop_body
      %s25 = ssub.s32 %s20, 1
      %s26 = ssub.s32 %s20, 2
      %s27 = sadd.s32 %s20, 1
      %s28 = ssub.s32 %s20, %s27
      %p29 = scmp.eq.s32.totalorder %s28, 0
      %s31 = sadd.s32 %s30, 1
      %s32 = scalar_select %p29, %s30, %s31
      %p35 = pneg %p29
      %p36 = scmp.eq.s32.totalorder %s20, 3
      %p37 = por %p35, %p36
      %p38 = scmp.ne.s32.totalorder %s30, %s33
      %p39 = scmp.eq.s32.totalorder %s20, 0
      %p40 = por %p38, %p39
      %p41 = scmp.ne.s32.totalorder %s30, %s33
      %p42 = scmp.eq.s32.totalorder %s25, 3
      %p43 = por %p41, %p42
      %p44 = scmp.ne.s32.totalorder %s33, %s34
      %p45 = scmp.eq.s32.totalorder %s25, 0
      %p46 = por %p44, %p45
      %p47 = scmp.ne.s32.totalorder %s33, %s34
      %p48 = scmp.eq.s32.totalorder %s26, 3
      %p49 = por %p47, %p48
      %p51 = scmp.ne.s32.totalorder %s34, %s50
      %p52 = scmp.eq.s32.totalorder %s26, 0
      %p53 = por %p51, %p52
      %s55 = sadd.s32 %s54, 1
      %p58 = scmp.eq.s32.totalorder %s20, 3
      %p59 = scmp.ne.s32.totalorder %s54, %s56
      %p60 = scmp.eq.s32.totalorder %s20, 0
      %p61 = por %p59, %p60
      %p62 = scmp.ne.s32.totalorder %s54, %s56
      %p63 = scmp.eq.s32.totalorder %s25, 3
      %p64 = por %p62, %p63
      %p65 = scmp.ne.s32.totalorder %s56, %s57
      %p66 = scmp.eq.s32.totalorder %s25, 0
      %p67 = por %p65, %p66
      %p68 = scmp.ne.s32.totalorder %s56, %s57
      %p69 = scmp.eq.s32.totalorder %s26, 3
      %p70 = por %p68, %p69
      %p72 = scmp.ne.s32.totalorder %s57, %s71
      %p73 = scmp.eq.s32.totalorder %s26, 0
      %p74 = por %p72, %p73
      %s76 = sadd.s32 %s75, 1
      %p79 = scmp.eq.s32.totalorder %s20, 3
      %p80 = scmp.ne.s32.totalorder %s75, %s77
      %p81 = scmp.eq.s32.totalorder %s20, 0
      %p82 = por %p80, %p81
      %p83 = scmp.ne.s32.totalorder %s75, %s77
      %p84 = scmp.eq.s32.totalorder %s25, 3
      %p85 = por %p83, %p84
      %p86 = scmp.ne.s32.totalorder %s77, %s78
      %p87 = scmp.eq.s32.totalorder %s25, 0
      %p88 = por %p86, %p87
      %p89 = scmp.ne.s32.totalorder %s77, %s78
      %p90 = scmp.eq.s32.totalorder %s26, 3
      %p91 = por %p89, %p90
      %p93 = scmp.ne.s32.totalorder %s78, %s92
      %p94 = scmp.eq.s32.totalorder %s26, 0
      %p95 = por %p93, %p94
      %s97 = sadd.s32 %s96, 1
      %p100 = scmp.eq.s32.totalorder %s20, 3
      %p101 = scmp.ne.s32.totalorder %s96, %s98
      %p102 = scmp.eq.s32.totalorder %s20, 0
      %p103 = por %p101, %p102
      %p104 = scmp.ne.s32.totalorder %s96, %s98
      %p105 = scmp.eq.s32.totalorder %s25, 3
      %p106 = por %p104, %p105
      %p107 = scmp.ne.s32.totalorder %s98, %s99
      %p108 = scmp.eq.s32.totalorder %s25, 0
      %p109 = por %p107, %p108
      %p110 = scmp.ne.s32.totalorder %s98, %s99
      %p111 = scmp.eq.s32.totalorder %s26, 3
      %p112 = por %p110, %p111
      %p114 = scmp.ne.s32.totalorder %s99, %s113
      %p115 = scmp.eq.s32.totalorder %s26, 0
      %p116 = por %p114, %p115
      %s118 = sadd.s32 %s117, 1
      %p121 = scmp.eq.s32.totalorder %s20, 3
      %p122 = scmp.ne.s32.totalorder %s117, %s119
      %p123 = scmp.eq.s32.totalorder %s20, 0
      %p124 = por %p122, %p123
      %p125 = scmp.ne.s32.totalorder %s117, %s119
      %p126 = scmp.eq.s32.totalorder %s25, 3
      %p127 = por %p125, %p126
      %p128 = scmp.ne.s32.totalorder %s119, %s120
      %p129 = scmp.eq.s32.totalorder %s25, 0
      %p130 = por %p128, %p129
      %p131 = scmp.ne.s32.totalorder %s119, %s120
      %p132 = scmp.eq.s32.totalorder %s26, 3
      %p133 = por %p131, %p132
      %p135 = scmp.ne.s32.totalorder %s120, %s134
      %p136 = scmp.eq.s32.totalorder %s26, 0
      %p137 = por %p135, %p136
      %s139 = sadd.s32 %s138, 1
      %p142 = scmp.eq.s32.totalorder %s20, 3
      %p143 = scmp.ne.s32.totalorder %s138, %s140
      %p144 = scmp.eq.s32.totalorder %s20, 0
      %p145 = por %p143, %p144
      %p146 = scmp.ne.s32.totalorder %s138, %s140
      %p147 = scmp.eq.s32.totalorder %s25, 3
      %p148 = por %p146, %p147
      %p149 = scmp.ne.s32.totalorder %s140, %s141
      %p150 = scmp.eq.s32.totalorder %s25, 0
      %p151 = por %p149, %p150
      %p152 = scmp.ne.s32.totalorder %s140, %s141
      %p153 = scmp.eq.s32.totalorder %s26, 3
      %p154 = por %p152, %p153
      %p156 = scmp.ne.s32.totalorder %s141, %s155
      %p157 = scmp.eq.s32.totalorder %s26, 0
      %p158 = por %p156, %p157
      %s159 = ssub.s32 %s20, %s27
      %p160 = scmp.eq.s32.totalorder %s159, 0
      %s162 = sadd.s32 %s161, 1
      %s163 = scalar_select %p160, %s161, %s162
      %p166 = pneg %p160
      %p167 = scmp.eq.s32.totalorder %s20, 3
      %p168 = por %p166, %p167
      %p169 = scmp.ne.s32.totalorder %s161, %s164
      %p170 = scmp.eq.s32.totalorder %s20, 0
      %p171 = por %p169, %p170
      %p172 = scmp.ne.s32.totalorder %s161, %s164
      %p173 = scmp.eq.s32.totalorder %s25, 3
      %p174 = por %p172, %p173
      %p175 = scmp.ne.s32.totalorder %s164, %s165
      %p176 = scmp.eq.s32.totalorder %s25, 0
      %p177 = por %p175, %p176
      %p178 = scmp.ne.s32.totalorder %s164, %s165
      %p179 = scmp.eq.s32.totalorder %s26, 3
      %p180 = por %p178, %p179
      %p182 = scmp.ne.s32.totalorder %s165, %s181
      %p183 = scmp.eq.s32.totalorder %s26, 0
      %p184 = por %p182, %p183
      %p185 = scmp.le.s32.totalorder 1, %s20
      %p186 = scmp.lt.s32.totalorder %s20, 5
      %p187 = pnand %p185, %p186
      %p188 = pneg %p187
      // Predicated region
      $region9: #{tpu_custom_call.1} parent=5 // pred_check
        _
      $region10: #{tpu_custom_call.1} parent=5 // pred_check_branch
        %190 = sbr.rel (%p187) target = $region12
      $region11: #{tpu_custom_call.1} parent=5 // pred_region
        %s191 = ssub.s32 %s20, 1
        // Predicated region
        $region13: #{tpu_custom_call.1} parent=11 // pred_check
          %p192 = pneg %p67
        $region14: #{tpu_custom_call.1} parent=11 // pred_check_branch
          %194 = sbr.rel (%p192) target = $region16
        $region15: #{tpu_custom_call.1} parent=11 // pred_region
          %196 = vsyncadd [#allocation7], 0
          %s198 = sshll.u32 %s1, 4
          %s199 = int_to_ptr.hbm [resolvable:$true] %s198
          %s200 = sshll.u32 [#allocation6], 4
          %s201 = int_to_ptr.vmem [resolvable:$true] %s200
          %203 = dma.hbm_to_vmem [thread:$0]  %s199, 16, %s201, [#allocation7]
        $region16: #{tpu_custom_call.1} parent=11 // pred_fallthru
          _
        // Predicated region
        $region17: #{tpu_custom_call.1} parent=11 // pred_check
          %p204 = pneg %p88
        $region18: #{tpu_custom_call.1} parent=11 // pred_check_branch
          %206 = sbr.rel (%p204) target = $region20
        $region19: #{tpu_custom_call.1} parent=11 // pred_region
          _
        $region20: #{tpu_custom_call.1} parent=11 // pred_fallthru
          _
        // Predicated region
        $region21: #{tpu_custom_call.1} parent=11 // pred_check
          %p207 = pneg %p109
        $region22: #{tpu_custom_call.1} parent=11 // pred_check_branch
          %209 = sbr.rel (%p207) target = $region24
        $region23: #{tpu_custom_call.1} parent=11 // pred_region
          %211 = vsyncadd [#allocation7], 0
          %s213 = sshll.u32 %s3, 4
          %s214 = int_to_ptr.hbm [resolvable:$true] %s213
          %s215 = sshll.u32 [#allocation8], 4
          %s216 = int_to_ptr.vmem [resolvable:$true] %s215
          %218 = dma.hbm_to_vmem [thread:$0]  %s214, 64, %s216, [#allocation7]
        $region24: #{tpu_custom_call.1} parent=11 // pred_fallthru
          _
        // Predicated region
        $region25: #{tpu_custom_call.1} parent=11 // pred_check
          %p219 = pneg %p130
        $region26: #{tpu_custom_call.1} parent=11 // pred_check_branch
          %221 = sbr.rel (%p219) target = $region28
        $region27: #{tpu_custom_call.1} parent=11 // pred_region
          %223 = vsyncadd [#allocation10], 0
          %s224 = sshll.u32 %s4, 4
          %s225 = int_to_ptr.hbm [resolvable:$true] %s224
          %s226 = sshll.u32 [#allocation9], 4
          %s227 = int_to_ptr.vmem [resolvable:$true] %s226
          %232 = dma.hbm_to_vmem [thread:$0]  %s225, 1024, %s227, [#allocation10], 64, 64, 4
        $region28: #{tpu_custom_call.1} parent=11 // pred_fallthru
          _
        // Predicated region
        $region29: #{tpu_custom_call.1} parent=11 // pred_check
          %p233 = pneg %p151
        $region30: #{tpu_custom_call.1} parent=11 // pred_check_branch
          %235 = sbr.rel (%p233) target = $region32
        $region31: #{tpu_custom_call.1} parent=11 // pred_region
          _
        $region32: #{tpu_custom_call.1} parent=11 // pred_fallthru
          _
      $region12: #{tpu_custom_call.1} parent=5 // pred_fallthru
        _
      %p236 = scmp.lt.s32.totalorder %s20, 4
      // Predicated region
      $region33: #{tpu_custom_call.1} parent=5 // pred_check
        %p237 = pneg %p236
      $region34: #{tpu_custom_call.1} parent=5 // pred_check_branch
        %239 = sbr.rel (%p237) target = $region36
      $region35: #{tpu_custom_call.1} parent=5 // pred_region
        // Predicated region
        $region37: #{tpu_custom_call.1} parent=35 // pred_check
          %p240 = pneg %p40
        $region38: #{tpu_custom_call.1} parent=35 // pred_check_branch
          %242 = sbr.rel (%p240) target = $region40
        $region39: #{tpu_custom_call.1} parent=35 // pred_region
          %s243 = sand.u32 %s30, 1
          %s244 = scalar_lea.sflag [#allocation4], %s243
          %s245 = sand.u32 %s30, 1
          %s246 = smul.addr %s245, 16
          %s247 = scalar_lea.vmem [#allocation3], %s246
          %249 = vsyncadd %s244, 0
          %s250 = smul.addr %s20, 2
          %s251 = smul.addr %s250, 8
          %s252 = scalar_lea.hbm %s0, %s251
          %s253 = sshll.u32 %s252, 4
          %s254 = int_to_ptr.hbm [resolvable:$true] %s253
          %s255 = sshll.u32 %s247, 4
          %s256 = int_to_ptr.vmem [resolvable:$true] %s255
          %261 = dma.hbm_to_vmem [thread:$0]  %s254, 256, %s256, %s244, 128, 128, 8
        $region40: #{tpu_custom_call.1} parent=35 // pred_fallthru
          _
      $region36: #{tpu_custom_call.1} parent=5 // pred_fallthru
        _
      %p262 = scmp.le.s32.totalorder 1, %s20
      %p263 = scmp.lt.s32.totalorder %s20, 5
      %p264 = pnand %p262, %p263
      %p265 = pneg %p264
      // Predicated region
      $region41: #{tpu_custom_call.1} parent=5 // pred_check
        _
      $region42: #{tpu_custom_call.1} parent=5 // pred_check_branch
        %267 = sbr.rel (%p264) target = $region44
      $region43: #{tpu_custom_call.1} parent=5 // pred_region
        %s268 = ssub.s32 %s20, 1
        %s269 = sand.u32 %s33, 1
        %s270 = scalar_lea.sflag [#allocation4], %s269
        %s271 = sand.u32 %s33, 1
        %s272 = smul.addr %s271, 16
        %s273 = scalar_lea.vmem [#allocation3], %s272
        // Predicated region
        $region45: #{tpu_custom_call.1} parent=43 // pred_check
          %p274 = pneg %p46
        $region46: #{tpu_custom_call.1} parent=43 // pred_check_branch
          %276 = sbr.rel (%p274) target = $region48
        $region47: #{tpu_custom_call.1} parent=43 // pred_region
          %278 = dma.done %s270, 256
        $region48: #{tpu_custom_call.1} parent=43 // pred_fallthru
          _
        // Predicated region
        $region49: #{tpu_custom_call.1} parent=43 // pred_check
          %p279 = pneg %p67
        $region50: #{tpu_custom_call.1} parent=43 // pred_check_branch
          %281 = sbr.rel (%p279) target = $region52
        $region51: #{tpu_custom_call.1} parent=43 // pred_region
          %283 = dma.done [#allocation7], 16
        $region52: #{tpu_custom_call.1} parent=43 // pred_fallthru
          _
        // Predicated region
        $region53: #{tpu_custom_call.1} parent=43 // pred_check
          %p284 = pneg %p109
        $region54: #{tpu_custom_call.1} parent=43 // pred_check_branch
          %286 = sbr.rel (%p284) target = $region56
        $region55: #{tpu_custom_call.1} parent=43 // pred_region
          %288 = dma.done [#allocation7], 64
        $region56: #{tpu_custom_call.1} parent=43 // pred_fallthru
          _
        // Predicated region
        $region57: #{tpu_custom_call.1} parent=43 // pred_check
          %p289 = pneg %p130
        $region58: #{tpu_custom_call.1} parent=43 // pred_check_branch
          %291 = sbr.rel (%p289) target = $region60
        $region59: #{tpu_custom_call.1} parent=43 // pred_region
          %293 = dma.done [#allocation10], 1024
        $region60: #{tpu_custom_call.1} parent=43 // pred_fallthru
          _
        %s294 = sand.u32 %s33, 1
        %s295 = scalar_lea.sflag [#allocation4], %s294
        %s296 = sand.u32 %s33, 1
        %s297 = smul.addr %s296, 16
        %s298 = scalar_lea.vmem [#allocation3], %s297
        %p299 = pneg %p46
        %p300 = pneg %p43
        %p301 = pneg %p67
        %p302 = pneg %p64
        %p303 = pneg %p88
        %p304 = pneg %p85
        %p305 = pneg %p109
        %p306 = pneg %p106
        %p307 = pneg %p130
        %p308 = pneg %p127
        %p309 = pneg %p151
        %p310 = pneg %p148
        %p311 = pneg %p177
        %p312 = pneg %p174
        %s313 = sand.u32 %s164, 1
        %s314 = scalar_lea.sflag [#allocation5], %s313
        %s315 = sand.u32 %s164, 1
        %s316 = smul.addr %s315, 16
        %s317 = scalar_lea.vmem [#allocation11], %s316
        %v318 = vld [vmem:[%s273] sm:$0xff]
        %v319 = vld [vmem:[%s273 + $0x8] sm:$0xff]
        %320 = vadd.xlane.f32.xlu0 %v318
        %v321 = vpop.xlane.xlu0 %320
        %322 = vadd.xlane.f32.xlu0 %v319
        %v323 = vpop.xlane.xlu0 %322
        %v324 = vmul.f32 %v321, 0.0078125
        %v325 = vmul.f32 %v323, 0.0078125
        %v326 = vmul.f32 %v318, %v318
        %v327 = vmul.f32 %v319, %v319
        %328 = vadd.xlane.f32.xlu0 %v326
        %v329 = vpop.xlane.xlu0 %328
        %330 = vadd.xlane.f32.xlu0 %v327
        %v331 = vpop.xlane.xlu0 %330
        %v332 = vmul.f32 %v329, 0.0078125
        %v333 = vmul.f32 %v331, 0.0078125
        %v334 = vmul.f32 %v324, %v324
        %v335 = vmul.f32 %v325, %v325
        %v336 = vsub.f32 %v332, %v334
        %v337 = vsub.f32 %v333, %v335
        %v338 = vsub.f32 %v318, %v324
        %v339 = vsub.f32 %v319, %v325
        %v340 = vadd.f32 %v336, 1e-05
        %v341 = vadd.f32 %v337, 1e-05
        %v342 = vrsqrt.pop %v340
        %v343 = vmul.f32 %v342, %v340
        %v344 = vmul.f32 %v343, %v342
        %v345 = vmul.f32 0.5, %v344
        %v346 = vsub.f32 1.5, %v345
        %v347 = vmul.f32 %v342, %v346
        %vm348 = vweird.f32 %v340
        %vm349 = vweird.f32 %v342
        %vm350 = vmor %vm348, %vm349
        %v351 = vsel %vm350, %v342, %v347
        %v352 = vrsqrt.pop %v341
        %v353 = vmul.f32 %v352, %v341
        %v354 = vmul.f32 %v353, %v352
        %v355 = vmul.f32 0.5, %v354
        %v356 = vsub.f32 1.5, %v355
        %v357 = vmul.f32 %v352, %v356
        %vm358 = vweird.f32 %v341
        %vm359 = vweird.f32 %v352
        %vm360 = vmor %vm358, %vm359
        %v361 = vsel %vm360, %v352, %v357
        %v362 = vmul.f32 %v338, %v351
        %v363 = vmul.f32 %v339, %v361
        %v364 = vld [vmem:[#allocation6] sm:$0x1]
        %v366 = vperm.slane %v364, 0
        %v368 = vmul.f32 %v362, %v366
        %v369 = vmul.f32 %v363, %v366
        %v370 = vld [vmem:[%s2] sm:$0x1]
        %v372 = vperm.slane %v370, 0
        %v374 = vadd.f32 %v368, %v372
        %v375 = vadd.f32 %v369, %v372
        %376 = vst [vmem:[#allocation2] sm:$0xff] 0.0
        %377 = vst [vmem:[#allocation2 + $0x18] sm:$0x1] 0.0
        %378 = vst [vmem:[#allocation2 + $0x8] sm:$0xff] %v374
        %379 = vst [vmem:[#allocation2 + $0x10] sm:$0xff] %v375
        %v380 = vld [vmem:[#allocation8] sm:$0x7]
        %v381 = vld [vmem:[#allocation2 + $0x7] sm:$0xff]
        %v382 = vld [vmem:[#allocation2 + $0xf] sm:$0xff]
        %v383 = vperm.slane %v380, 0
        %v384 = vmul.f32 %v381, %v383
        %v385 = vmul.f32 %v382, %v383
        %v386 = vld [vmem:[#allocation2 + $0x8] sm:$0xff]
        %v387 = vld [vmem:[#allocation2 + $0x10] sm:$0xff]
        %v388 = vperm.slane %v380, 1
        %v389 = vmul.f32 %v386, %v388
        %v390 = vmul.f32 %v387, %v388
        %v391 = vadd.f32 %v384, %v389
        %v392 = vadd.f32 %v385, %v390
        %v393 = vld [vmem:[#allocation2 + $0x9] sm:$0xff]
        %v394 = vld [vmem:[#allocation2 + $0x11] sm:$0xff]
        %v395 = vperm.slane %v380, 2
        %v396 = vmul.f32 %v393, %v395
        %v397 = vmul.f32 %v394, %v395
        %v398 = vadd.f32 %v391, %v396
        %v399 = vadd.f32 %v392, %v397
        %v400 = vld [vmem:[#allocation9] sm:$0xf]
        %v401 = vld [vmem:[#allocation9 + $0x4] sm:$0xf]
        %v402 = vld [vmem:[#allocation9 + $0x8] sm:$0xf]
        %v403 = vld [vmem:[#allocation9 + $0xc] sm:$0xf]
        %v404 = vld [vmem:[#allocation9 + $0x10] sm:$0xf]
        %v405 = vld [vmem:[#allocation9 + $0x14] sm:$0xf]
        %v406 = vld [vmem:[#allocation9 + $0x18] sm:$0xf]
        %v407 = vld [vmem:[#allocation9 + $0x1c] sm:$0xf]
        %v408 = vld [vmem:[#allocation9 + $0x20] sm:$0xf]
        %v409 = vld [vmem:[#allocation9 + $0x24] sm:$0xf]
        %v410 = vld [vmem:[#allocation9 + $0x28] sm:$0xf]
        %v411 = vld [vmem:[#allocation9 + $0x2c] sm:$0xf]
        %v412 = vld [vmem:[#allocation9 + $0x30] sm:$0xf]
        %v413 = vld [vmem:[#allocation9 + $0x34] sm:$0xf]
        %v414 = vld [vmem:[#allocation9 + $0x38] sm:$0xf]
        %v415 = vld [vmem:[#allocation9 + $0x3c] sm:$0xf]
        %v416 = vpack.c.bf16 %v399, %v398
        %v417 = vld [vmem:[%s5] sm:$0x1]
        %v419 = vperm.slane %v417, 0
        %v437 = vunpack.c.l.b16 %v400
        %v438 = vunpack.c.l.b16 %v401
        %v439 = vunpack.c.l.b16 %v402
        %v440 = vunpack.c.l.b16 %v403
        %v441 = vunpack.c.l.b16 %v404
        %v442 = vunpack.c.l.b16 %v405
        %v443 = vunpack.c.l.b16 %v406
        %v444 = vunpack.c.l.b16 %v407
        %v445 = vunpack.c.l.b16 %v408
        %v446 = vunpack.c.l.b16 %v409
        %v447 = vunpack.c.l.b16 %v410
        %v448 = vunpack.c.l.b16 %v411
        %v449 = vunpack.c.l.b16 %v412
        %v450 = vunpack.c.l.b16 %v413
        %v451 = vunpack.c.l.b16 %v414
        %v452 = vunpack.c.l.b16 %v415
        %v453 = vpack.c.b16 %v438, %v437
        %v454 = vpack.c.b16 %v440, %v439
        %v455 = vpack.c.b16 %v442, %v441
        %v456 = vpack.c.b16 %v444, %v443
        %v457 = vpack.c.b16 %v446, %v445
        %v458 = vpack.c.b16 %v448, %v447
        %v459 = vpack.c.b16 %v450, %v449
        %v460 = vpack.c.b16 %v452, %v451
        %469 = vmatpush.bf16.msra.mxu0 %v460
        %470 = vmatpush.bf16.msra.mxu0 %v459
        %471 = vmatpush.bf16.msra.mxu0 %v458
        %472 = vmatpush.bf16.msra.mxu0 %v457
        %473 = vmatpush.bf16.msra.mxu0 %v456
        %474 = vmatpush.bf16.msra.mxu0 %v455
        %475 = vmatpush.bf16.msra.mxu0 %v454
        %476 = vmatpush.bf16.msra.mxu0 %v453
        %477 = vmatmul.bf16.gmra.mxu0 %v416
        %v478 = vpop.f32.mrf.mxu0
        %v479 = vadd.f32 %v419, %v478
        %v480 = vpop.f32.mrf.mxu0
        %v481 = vadd.f32 %v419, %v480
        %482 = vdwg.mxu0
        %v483 = vmax.f32 %v479, 0.0
        %v484 = vmax.f32 %v481, 0.0
        %485 = vst [vmem:[%s317] sm:$0xff] %v483
        %486 = vst [vmem:[%s317 + $0x8] sm:$0xff] %v484
        %s487 = sand.u32 %s164, 1
        %s488 = scalar_lea.sflag [#allocation5], %s487
        %s489 = sand.u32 %s164, 1
        %s490 = smul.addr %s489, 16
        %s491 = scalar_lea.vmem [#allocation11], %s490
        // Predicated region
        $region61: #{tpu_custom_call.1} parent=43 // pred_check
          %p492 = pneg %p174
        $region62: #{tpu_custom_call.1} parent=43 // pred_check_branch
          %494 = sbr.rel (%p492) target = $region64
        $region63: #{tpu_custom_call.1} parent=43 // pred_region
          %496 = vsyncadd %s488, 0
          %s497 = smul.addr %s25, 2
          %s498 = smul.addr %s497, 8
          %s499 = scalar_lea.hbm %s6, %s498
          %s500 = sshll.u32 %s491, 4
          %s501 = int_to_ptr.vmem [resolvable:$true] %s500
          %s502 = sshll.u32 %s499, 4
          %s503 = int_to_ptr.hbm [resolvable:$true] %s502
          %508 = dma.vmem_to_hbm [thread:$0]  %s501, 256, %s503, %s488, 128, 128, 8
        $region64: #{tpu_custom_call.1} parent=43 // pred_fallthru
          _
      $region44: #{tpu_custom_call.1} parent=5 // pred_fallthru
        _
      %p509 = scmp.le.s32.totalorder 2, %s20
      // Predicated region
      $region65: #{tpu_custom_call.1} parent=5 // pred_check
        %p510 = pneg %p509
      $region66: #{tpu_custom_call.1} parent=5 // pred_check_branch
        %512 = sbr.rel (%p510) target = $region68
      $region67: #{tpu_custom_call.1} parent=5 // pred_region
        %s513 = ssub.s32 %s20, 2
        // Predicated region
        $region69: #{tpu_custom_call.1} parent=67 // pred_check
          %p514 = pneg %p180
        $region70: #{tpu_custom_call.1} parent=67 // pred_check_branch
          %516 = sbr.rel (%p514) target = $region72
        $region71: #{tpu_custom_call.1} parent=67 // pred_region
          %s517 = sand.u32 %s165, 1
          %s518 = scalar_lea.sflag [#allocation5], %s517
          %s519 = sand.u32 %s165, 1
          %s520 = smul.addr %s519, 16
          %s521 = scalar_lea.vmem [#allocation11], %s520
          %523 = dma.done %s518, 256
        $region72: #{tpu_custom_call.1} parent=67 // pred_fallthru
          _
      $region68: #{tpu_custom_call.1} parent=5 // pred_fallthru
        _
    $region6: #{tpu_custom_call.1} parent=1 // loop_footer
      %s24 = sadd.s32 1, %s20
    $region7: #{tpu_custom_call.1} parent=1 // loop_footer_branch
      %19 = sbr.rel target = $region3
    $region8: #{tpu_custom_call.1} parent=1 // loop_exit
      _
    %524 = vsyncpa [#allocation4], 1
    %s525 = scalar_lea.sflag [#allocation4], 1
    %526 = vsyncpa %s525, 1
    %527 = vsyncpa [#allocation7], 1
    %528 = vsyncpa [#allocation10], 1
    %529 = vsyncpa [#allocation5], 1
    %s530 = scalar_lea.sflag [#allocation5], 1
    %531 = vsyncpa %s530, 1

</llo_original>
